<compile_context>
chip_gen: v5e
topology: v5e:2x2
jax: 0.10.0
libtpu: 0.0.40
codegen_flags: <defaults>
</compile_context>

<pallas_src>
import math
import functools

import jax
import jax.numpy as jnp
import numpy as np
from jax.experimental import pallas as pl
from jax.experimental.pallas import tpu as pltpu

LN_EPS = 1e-5  # nn.LayerNorm default


def _layernorm(h, gamma, beta):
    mu = jnp.mean(h, axis=-1, keepdims=True)
    var = jnp.mean((h - mu) ** 2, axis=-1, keepdims=True)
    return (h - mu) * jax.lax.rsqrt(var + LN_EPS) * gamma + beta


def _approx_recip(x):
    # EUP approximate reciprocal; fall back to exact division on old jax versions.
    if hasattr(pl, "reciprocal"):
        return pl.reciprocal(x, approx=True)
    return 1.0 / x


def encoder_layer_kernel(
    x_ref, mask_ref,
    wq_ref, bq_ref, wk_ref, bk_ref, wv_ref, bv_ref, wo_ref, bo_ref,
    g1_ref, be1_ref,
    w1_ref, b1_ref, w2_ref, b2_ref,
    g2_ref, be2_ref,
    o_ref,
    *, n_heads, d_k, block_b, seq_len,
):
    Bt, L = block_b, seq_len
    D = n_heads * d_k
    M = Bt * L

    # Flatten (Bt, L, D) -> (Bt*L, D): all Linear layers see a tall M dim.
    x = x_ref[...].astype(jnp.float32).reshape(M, D)

    # int8 mask (1 keep / 0 masked); compare once, reuse for every head.
    masked = mask_ref[...].astype(jnp.float32) == 0.0          # [Bt, L, L] bool

    # ---- QKV projections (single big matmuls over M = Bt*L rows) ----
    inv_sqrt_dk = jnp.float32(1.0 / math.sqrt(d_k))
    q = (jnp.dot(x, wq_ref[...], preferred_element_type=jnp.float32)
         + bq_ref[...]) * inv_sqrt_dk                          # scale folded into Q once
    k = jnp.dot(x, wk_ref[...], preferred_element_type=jnp.float32) + bk_ref[...]
    v = jnp.dot(x, wv_ref[...], preferred_element_type=jnp.float32) + bv_ref[...]

    # ---- Attention: per head, batched over the Bt batch elements ----
    # Output projection accumulated per head (no lane-dim concatenate).
    # TODO(synk): for large L, tile the query dim with flash-style online softmax
    # instead of materializing the full [Bt, L, L] score matrix (VMEM cap on v7x).
    proj = None
    for h in range(n_heads):
        lo, hi = h * d_k, (h + 1) * d_k
        qh = q[:, lo:hi].reshape(Bt, L, d_k)
        kh = k[:, lo:hi].reshape(Bt, L, d_k)
        vh = v[:, lo:hi].reshape(Bt, L, d_k)

        # contraction over d_k with K untransposed (native NT matmul, no XLU .T)
        scores = jnp.einsum("bld,bmd->blm", qh, kh,
                            preferred_element_type=jnp.float32)   # [Bt, L, L]
        scores = jnp.where(masked, jnp.float32(-1e9), scores)

        m = jnp.max(scores, axis=-1, keepdims=True)
        e = jnp.exp(scores - m)
        denom = jnp.sum(e, axis=-1, keepdims=True)
        attn = e * _approx_recip(denom)

        ctx = jnp.einsum("blm,bmd->bld", attn, vh,
                         preferred_element_type=jnp.float32)      # [Bt, L, d_k]
        contrib = jnp.dot(ctx.reshape(M, d_k), wo_ref[lo:hi, :],
                          preferred_element_type=jnp.float32)     # [M, D]
        proj = contrib if proj is None else proj + contrib

    x2 = proj + bo_ref[...]

    # ---- Add & Norm 1 ----
    x1 = _layernorm(x + x2, g1_ref[...], be1_ref[...])

    # ---- Position-wise FFN ----
    hdn = jnp.maximum(
        jnp.dot(x1, w1_ref[...], preferred_element_type=jnp.float32) + b1_ref[...],
        0.0)
    x2 = jnp.dot(hdn, w2_ref[...], preferred_element_type=jnp.float32) + b2_ref[...]

    # ---- Add & Norm 2 ----
    out = _layernorm(x1 + x2, g2_ref[...], be2_ref[...])

    o_ref[...] = out.reshape(Bt, L, D).astype(o_ref.dtype)


def encoder_layer_forward(x, mask, params, *, n_heads, block_b=None):
    """x: [B, L, D] f32, mask: [B, L, L] (1 keep / 0 masked, any numeric dtype)."""
    B, L, D = x.shape
    d_ff = params["w1"].shape[1]
    d_k = D // n_heads
    if block_b is None:
        block_b = B                      # toy shapes: one grid step over all batches
    assert B % block_b == 0

    mask_i8 = (mask != 0).astype(jnp.int8)   # 4x smaller HBM/DMA footprint than f32

    def rep2(shape):
        return pl.BlockSpec(shape, lambda b: (0, 0))

    kernel = functools.partial(encoder_layer_kernel, n_heads=n_heads, d_k=d_k,
                               block_b=block_b, seq_len=L)

    in_specs = [
        pl.BlockSpec((block_b, L, D), lambda b: (b, 0, 0)),   # x
        pl.BlockSpec((block_b, L, L), lambda b: (b, 0, 0)),   # mask (int8)
        rep2((D, D)), rep2((1, D)),                           # Wq, bq
        rep2((D, D)), rep2((1, D)),                           # Wk, bk
        rep2((D, D)), rep2((1, D)),                           # Wv, bv
        rep2((D, D)), rep2((1, D)),                           # Wo, bo
        rep2((1, D)), rep2((1, D)),                           # gamma1, beta1
        rep2((D, d_ff)), rep2((1, d_ff)),                     # W1, b1
        rep2((d_ff, D)), rep2((1, D)),                        # W2, b2
        rep2((1, D)), rep2((1, D)),                           # gamma2, beta2
    ]

    return pl.pallas_call(
        kernel,
        out_shape=jax.ShapeDtypeStruct((B, L, D), jnp.float32),
        grid_spec=pltpu.PrefetchScalarGridSpec(
            num_scalar_prefetch=0,
            grid=(B // block_b,),
            in_specs=in_specs,
            out_specs=pl.BlockSpec((block_b, L, D), lambda b: (b, 0, 0)),
        ),
        compiler_params=pltpu.CompilerParams(
            dimension_semantics=("parallel",)),   # batch axis is fully independent
    )(
        x, mask_i8,
        params["wq"], params["bq"], params["wk"], params["bk"],
        params["wv"], params["bv"], params["wo"], params["bo"],
        params["g1"], params["be1"],
        params["w1"], params["b1"], params["w2"], params["b2"],
        params["g2"], params["be2"],
    )


def reference_forward(x, mask, params, *, n_heads):
    """Pure-JAX reference mirroring the PyTorch module."""
    B, L, D = x.shape
    d_k = D // n_heads

    def lin(a, w, b):
        return a @ w + b

    q = lin(x, params["wq"], params["bq"]).reshape(B, L, n_heads, d_k).transpose(0, 2, 1, 3)
    k = lin(x, params["wk"], params["bk"]).reshape(B, L, n_heads, d_k).transpose(0, 2, 1, 3)
    v = lin(x, params["wv"], params["bv"]).reshape(B, L, n_heads, d_k).transpose(0, 2, 1, 3)
    scores = jnp.einsum("bhqd,bhkd->bhqk", q, k) / math.sqrt(d_k)
    scores = jnp.where(mask[:, None, :, :] == 0, -1e9, scores)
    attn = jax.nn.softmax(scores, axis=-1)
    out = jnp.einsum("bhqk,bhkd->bhqd", attn, v).transpose(0, 2, 1, 3).reshape(B, L, D)
    x2 = lin(out, params["wo"], params["bo"])

    def ln(h, g, be):
        mu = jnp.mean(h, -1, keepdims=True)
        var = jnp.mean((h - mu) ** 2, -1, keepdims=True)
        return (h - mu) / jnp.sqrt(var + LN_EPS) * g + be

    x1 = ln(x + x2, params["g1"], params["be1"])
    x2 = lin(jnp.maximum(lin(x1, params["w1"], params["b1"]), 0.0),
             params["w2"], params["b2"])
    return ln(x1 + x2, params["g2"], params["be2"])


def init_params(key, d_model, d_ff):
    ks = jax.random.split(key, 12)
    s = 0.05
    return {
        "wq": jax.random.normal(ks[0], (d_model, d_model), jnp.float32) * s,
        "bq": jax.random.normal(ks[1], (1, d_model), jnp.float32) * s,
        "wk": jax.random.normal(ks[2], (d_model, d_model), jnp.float32) * s,
        "bk": jax.random.normal(ks[3], (1, d_model), jnp.float32) * s,
        "wv": jax.random.normal(ks[4], (d_model, d_model), jnp.float32) * s,
        "bv": jax.random.normal(ks[5], (1, d_model), jnp.float32) * s,
        "wo": jax.random.normal(ks[6], (d_model, d_model), jnp.float32) * s,
        "bo": jax.random.normal(ks[7], (1, d_model), jnp.float32) * s,
        "g1": jnp.ones((1, d_model), jnp.float32),
        "be1": jnp.zeros((1, d_model), jnp.float32),
        "w1": jax.random.normal(ks[8], (d_model, d_ff), jnp.float32) * s,
        "b1": jax.random.normal(ks[9], (1, d_ff), jnp.float32) * s,
        "w2": jax.random.normal(ks[10], (d_ff, d_model), jnp.float32) * s,
        "b2": jax.random.normal(ks[11], (1, d_model), jnp.float32) * s,
        "g2": jnp.ones((1, d_model), jnp.float32),
        "be2": jnp.zeros((1, d_model), jnp.float32),
    }


if __name__ == "__main__":
    B, L, d_model, n_heads, d_ff = 2, 8, 32, 4, 64

    key = jax.random.PRNGKey(0)
    kx, kp = jax.random.split(key)
    x = jax.random.normal(kx, (B, L, d_model), jnp.float32)
    # causal-style mask (1 = attend, 0 = masked), broadcast over heads
    mask = jnp.tril(jnp.ones((L, L), jnp.float32))[None].repeat(B, axis=0)
    params = init_params(kp, d_model, d_ff)

    out = encoder_layer_forward(x, mask, params, n_heads=n_heads)
    out = jax.block_until_ready(out)

    ref = reference_forward(x, mask, params, n_heads=n_heads)
    # tolerance slightly looser than before because the kernel uses the EUP
    # approximate reciprocal in the softmax denominator.
    np.testing.assert_allclose(np.asarray(out), np.asarray(ref), rtol=2e-3, atol=2e-3)

    print("KERNEL_OK")
</pallas_src>

<mosaic_0001>
module attributes {stable_mosaic.version = 11 : i64} {
  func.func @encoder_layer_kernel(%arg0: i32, %arg1: memref<2x8x32xf32, #tpu.memory_space<vmem>>, %arg2: memref<2x8x8xi8, #tpu.memory_space<vmem>>, %arg3: memref<32x32xf32, #tpu.memory_space<vmem>>, %arg4: memref<1x32xf32, #tpu.memory_space<vmem>>, %arg5: memref<32x32xf32, #tpu.memory_space<vmem>>, %arg6: memref<1x32xf32, #tpu.memory_space<vmem>>, %arg7: memref<32x32xf32, #tpu.memory_space<vmem>>, %arg8: memref<1x32xf32, #tpu.memory_space<vmem>>, %arg9: memref<32x32xf32, #tpu.memory_space<vmem>>, %arg10: memref<1x32xf32, #tpu.memory_space<vmem>>, %arg11: memref<1x32xf32, #tpu.memory_space<vmem>>, %arg12: memref<1x32xf32, #tpu.memory_space<vmem>>, %arg13: memref<32x64xf32, #tpu.memory_space<vmem>>, %arg14: memref<1x64xf32, #tpu.memory_space<vmem>>, %arg15: memref<64x32xf32, #tpu.memory_space<vmem>>, %arg16: memref<1x32xf32, #tpu.memory_space<vmem>>, %arg17: memref<1x32xf32, #tpu.memory_space<vmem>>, %arg18: memref<1x32xf32, #tpu.memory_space<vmem>>, %arg19: memref<2x8x32xf32, #tpu.memory_space<vmem>>) attributes {dimension_semantics = [#tpu.dimension_semantics<parallel>], iteration_bounds = array<i64: 1>, scalar_prefetch = 0 : i64, scratch_operands = 0 : i64, tpu.core_type = #tpu.core_type<tc>, window_params = [{transform_indices = @transform_0, window_bounds = array<i64: 2, 8, 32>}, {transform_indices = @transform_1, window_bounds = array<i64: 2, 8, 8>}, {pipeline_mode = #tpu.pipeline_mode<synchronous>, transform_indices = @transform_2, window_bounds = array<i64: 32, 32>}, {pipeline_mode = #tpu.pipeline_mode<synchronous>, transform_indices = @transform_3, window_bounds = array<i64: 1, 32>}, {pipeline_mode = #tpu.pipeline_mode<synchronous>, transform_indices = @transform_4, window_bounds = array<i64: 32, 32>}, {pipeline_mode = #tpu.pipeline_mode<synchronous>, transform_indices = @transform_5, window_bounds = array<i64: 1, 32>}, {pipeline_mode = #tpu.pipeline_mode<synchronous>, transform_indices = @transform_6, window_bounds = array<i64: 32, 32>}, {pipeline_mode = #tpu.pipeline_mode<synchronous>, transform_indices = @transform_7, window_bounds = array<i64: 1, 32>}, {pipeline_mode = #tpu.pipeline_mode<synchronous>, transform_indices = @transform_8, window_bounds = array<i64: 32, 32>}, {pipeline_mode = #tpu.pipeline_mode<synchronous>, transform_indices = @transform_9, window_bounds = array<i64: 1, 32>}, {pipeline_mode = #tpu.pipeline_mode<synchronous>, transform_indices = @transform_10, window_bounds = array<i64: 1, 32>}, {pipeline_mode = #tpu.pipeline_mode<synchronous>, transform_indices = @transform_11, window_bounds = array<i64: 1, 32>}, {pipeline_mode = #tpu.pipeline_mode<synchronous>, transform_indices = @transform_12, window_bounds = array<i64: 32, 64>}, {pipeline_mode = #tpu.pipeline_mode<synchronous>, transform_indices = @transform_13, window_bounds = array<i64: 1, 64>}, {pipeline_mode = #tpu.pipeline_mode<synchronous>, transform_indices = @transform_14, window_bounds = array<i64: 64, 32>}, {pipeline_mode = #tpu.pipeline_mode<synchronous>, transform_indices = @transform_15, window_bounds = array<i64: 1, 32>}, {pipeline_mode = #tpu.pipeline_mode<synchronous>, transform_indices = @transform_16, window_bounds = array<i64: 1, 32>}, {pipeline_mode = #tpu.pipeline_mode<synchronous>, transform_indices = @transform_17, window_bounds = array<i64: 1, 32>}, {transform_indices = @transform_18, window_bounds = array<i64: 2, 8, 32>}]} {
    %c0 = arith.constant 0 : index
    %c0_0 = arith.constant 0 : index
    %c0_1 = arith.constant 0 : index
    %0 = vector.load %arg1[%c0, %c0_0, %c0_1] : memref<2x8x32xf32, #tpu.memory_space<vmem>>, vector<2x8x32xf32>
    %1 = vector.shape_cast %0 : vector<2x8x32xf32> to vector<16x32xf32>
    %c0_2 = arith.constant 0 : index
    %c0_3 = arith.constant 0 : index
    %c0_4 = arith.constant 0 : index
    %2 = vector.load %arg2[%c0_2, %c0_3, %c0_4] : memref<2x8x8xi8, #tpu.memory_space<vmem>>, vector<2x8x8xi8>
    %3 = arith.sitofp %2 : vector<2x8x8xi8> to vector<2x8x8xf32>
    %cst = arith.constant 0.000000e+00 : f32
    %4 = vector.broadcast %cst : f32 to vector<2x8x8xf32>
    %5 = arith.cmpf oeq, %3, %4 : vector<2x8x8xf32>
    %c0_5 = arith.constant 0 : index
    %c0_6 = arith.constant 0 : index
    %6 = vector.load %arg3[%c0_5, %c0_6] : memref<32x32xf32, #tpu.memory_space<vmem>>, vector<32x32xf32>
    %cst_7 = arith.constant dense<0.000000e+00> : vector<16x32xf32>
    %7 = tpu.matmul %1, %6, %cst_7 {dimension_numbers = #tpu.dot_dimension_numbers<[1], [0], [0], [1], [0, 0, 1, 1], [], []>} : vector<16x32xf32>, vector<32x32xf32>, vector<16x32xf32> -> vector<16x32xf32>
    %c0_8 = arith.constant 0 : index
    %c0_9 = arith.constant 0 : index
    %8 = vector.load %arg4[%c0_8, %c0_9] : memref<1x32xf32, #tpu.memory_space<vmem>>, vector<1x32xf32>
    %9 = vector.broadcast %8 : vector<1x32xf32> to vector<16x32xf32>
    %10 = arith.addf %7, %9 : vector<16x32xf32>
    %cst_10 = arith.constant 0.353553385 : f32
    %11 = vector.broadcast %cst_10 : f32 to vector<16x32xf32>
    %12 = arith.mulf %10, %11 : vector<16x32xf32>
    %c0_11 = arith.constant 0 : index
    %c0_12 = arith.constant 0 : index
    %13 = vector.load %arg5[%c0_11, %c0_12] : memref<32x32xf32, #tpu.memory_space<vmem>>, vector<32x32xf32>
    %cst_13 = arith.constant dense<0.000000e+00> : vector<16x32xf32>
    %14 = tpu.matmul %1, %13, %cst_13 {dimension_numbers = #tpu.dot_dimension_numbers<[1], [0], [0], [1], [0, 0, 1, 1], [], []>} : vector<16x32xf32>, vector<32x32xf32>, vector<16x32xf32> -> vector<16x32xf32>
    %c0_14 = arith.constant 0 : index
    %c0_15 = arith.constant 0 : index
    %15 = vector.load %arg6[%c0_14, %c0_15] : memref<1x32xf32, #tpu.memory_space<vmem>>, vector<1x32xf32>
    %16 = vector.broadcast %15 : vector<1x32xf32> to vector<16x32xf32>
    %17 = arith.addf %14, %16 : vector<16x32xf32>
    %c0_16 = arith.constant 0 : index
    %c0_17 = arith.constant 0 : index
    %18 = vector.load %arg7[%c0_16, %c0_17] : memref<32x32xf32, #tpu.memory_space<vmem>>, vector<32x32xf32>
    %cst_18 = arith.constant dense<0.000000e+00> : vector<16x32xf32>
    %19 = tpu.matmul %1, %18, %cst_18 {dimension_numbers = #tpu.dot_dimension_numbers<[1], [0], [0], [1], [0, 0, 1, 1], [], []>} : vector<16x32xf32>, vector<32x32xf32>, vector<16x32xf32> -> vector<16x32xf32>
    %c0_19 = arith.constant 0 : index
    %c0_20 = arith.constant 0 : index
    %20 = vector.load %arg8[%c0_19, %c0_20] : memref<1x32xf32, #tpu.memory_space<vmem>>, vector<1x32xf32>
    %21 = vector.broadcast %20 : vector<1x32xf32> to vector<16x32xf32>
    %22 = arith.addf %19, %21 : vector<16x32xf32>
    %23 = vector.extract_strided_slice %12 {offsets = [0, 0], sizes = [16, 8], strides = [1, 1]} : vector<16x32xf32> to vector<16x8xf32>
    %24 = vector.shape_cast %23 : vector<16x8xf32> to vector<2x8x8xf32>
    %25 = vector.extract_strided_slice %17 {offsets = [0, 0], sizes = [16, 8], strides = [1, 1]} : vector<16x32xf32> to vector<16x8xf32>
    %26 = vector.shape_cast %25 : vector<16x8xf32> to vector<2x8x8xf32>
    %27 = vector.extract_strided_slice %22 {offsets = [0, 0], sizes = [16, 8], strides = [1, 1]} : vector<16x32xf32> to vector<16x8xf32>
    %28 = vector.shape_cast %27 : vector<16x8xf32> to vector<2x8x8xf32>
    "tpu.trace_start"() <{level = 10 : i32, message = "bld,bmd->blm"}> : () -> ()
    %cst_21 = arith.constant dense<0.000000e+00> : vector<2x8x8xf32>
    %29 = tpu.matmul %24, %26, %cst_21 {dimension_numbers = #tpu.dot_dimension_numbers<[2], [2], [1], [1], [0, 0, 0, 1, 1, 1], [0], [0]>} : vector<2x8x8xf32>, vector<2x8x8xf32>, vector<2x8x8xf32> -> vector<2x8x8xf32>
    %cst_22 = arith.constant -1.000000e+09 : f32
    "tpu.trace_stop"() : () -> ()
    %30 = vector.broadcast %cst_22 : f32 to vector<2x8x8xf32>
    %31 = arith.select %5, %30, %29 : vector<2x8x8xi1>, vector<2x8x8xf32>
    %cst_23 = arith.constant dense<0xFF800000> : vector<2x8xf32>
    %32 = vector.multi_reduction <maximumf>, %31, %cst_23 [2] : vector<2x8x8xf32> to vector<2x8xf32>
    %33 = vector.shape_cast %32 : vector<2x8xf32> to vector<2x8x1xf32>
    %34 = vector.broadcast %33 : vector<2x8x1xf32> to vector<2x8x8xf32>
    %35 = arith.subf %31, %34 : vector<2x8x8xf32>
    %36 = math.exp %35 : vector<2x8x8xf32>
    %cst_24 = arith.constant dense<0.000000e+00> : vector<2x8xf32>
    %37 = vector.multi_reduction <add>, %36, %cst_24 [2] : vector<2x8x8xf32> to vector<2x8xf32>
    %38 = vector.shape_cast %37 : vector<2x8xf32> to vector<2x8x1xf32>
    %39 = tpu.reciprocal %38 {approx = true} : vector<2x8x1xf32> -> vector<2x8x1xf32>
    %40 = vector.broadcast %39 : vector<2x8x1xf32> to vector<2x8x8xf32>
    %41 = arith.mulf %36, %40 : vector<2x8x8xf32>
    "tpu.trace_start"() <{level = 10 : i32, message = "blm,bmd->bld"}> : () -> ()
    %cst_25 = arith.constant dense<0.000000e+00> : vector<2x8x8xf32>
    %42 = tpu.matmul %41, %28, %cst_25 {dimension_numbers = #tpu.dot_dimension_numbers<[2], [1], [1], [2], [0, 0, 0, 1, 1, 2], [0], [0]>} : vector<2x8x8xf32>, vector<2x8x8xf32>, vector<2x8x8xf32> -> vector<2x8x8xf32>
    "tpu.trace_stop"() : () -> ()
    %43 = vector.shape_cast %42 : vector<2x8x8xf32> to vector<16x8xf32>
    %c0_26 = arith.constant 0 : index
    %c0_27 = arith.constant 0 : index
    %44 = vector.load %arg9[%c0_26, %c0_27] : memref<32x32xf32, #tpu.memory_space<vmem>>, vector<8x32xf32>
    %cst_28 = arith.constant dense<0.000000e+00> : vector<16x32xf32>
    %45 = tpu.matmul %43, %44, %cst_28 {dimension_numbers = #tpu.dot_dimension_numbers<[1], [0], [0], [1], [0, 0, 1, 1], [], []>} : vector<16x8xf32>, vector<8x32xf32>, vector<16x32xf32> -> vector<16x32xf32>
    %46 = vector.extract_strided_slice %12 {offsets = [0, 8], sizes = [16, 8], strides = [1, 1]} : vector<16x32xf32> to vector<16x8xf32>
    %47 = vector.shape_cast %46 : vector<16x8xf32> to vector<2x8x8xf32>
    %48 = vector.extract_strided_slice %17 {offsets = [0, 8], sizes = [16, 8], strides = [1, 1]} : vector<16x32xf32> to vector<16x8xf32>
    %49 = vector.shape_cast %48 : vector<16x8xf32> to vector<2x8x8xf32>
    %50 = vector.extract_strided_slice %22 {offsets = [0, 8], sizes = [16, 8], strides = [1, 1]} : vector<16x32xf32> to vector<16x8xf32>
    %51 = vector.shape_cast %50 : vector<16x8xf32> to vector<2x8x8xf32>
    "tpu.trace_start"() <{level = 10 : i32, message = "bld,bmd->blm"}> : () -> ()
    %cst_29 = arith.constant dense<0.000000e+00> : vector<2x8x8xf32>
    %52 = tpu.matmul %47, %49, %cst_29 {dimension_numbers = #tpu.dot_dimension_numbers<[2], [2], [1], [1], [0, 0, 0, 1, 1, 1], [0], [0]>} : vector<2x8x8xf32>, vector<2x8x8xf32>, vector<2x8x8xf32> -> vector<2x8x8xf32>
    %cst_30 = arith.constant -1.000000e+09 : f32
    "tpu.trace_stop"() : () -> ()
    %53 = vector.broadcast %cst_30 : f32 to vector<2x8x8xf32>
    %54 = arith.select %5, %53, %52 : vector<2x8x8xi1>, vector<2x8x8xf32>
    %cst_31 = arith.constant dense<0xFF800000> : vector<2x8xf32>
    %55 = vector.multi_reduction <maximumf>, %54, %cst_31 [2] : vector<2x8x8xf32> to vector<2x8xf32>
    %56 = vector.shape_cast %55 : vector<2x8xf32> to vector<2x8x1xf32>
    %57 = vector.broadcast %56 : vector<2x8x1xf32> to vector<2x8x8xf32>
    %58 = arith.subf %54, %57 : vector<2x8x8xf32>
    %59 = math.exp %58 : vector<2x8x8xf32>
    %cst_32 = arith.constant dense<0.000000e+00> : vector<2x8xf32>
    %60 = vector.multi_reduction <add>, %59, %cst_32 [2] : vector<2x8x8xf32> to vector<2x8xf32>
    %61 = vector.shape_cast %60 : vector<2x8xf32> to vector<2x8x1xf32>
    %62 = tpu.reciprocal %61 {approx = true} : vector<2x8x1xf32> -> vector<2x8x1xf32>
    %63 = vector.broadcast %62 : vector<2x8x1xf32> to vector<2x8x8xf32>
    %64 = arith.mulf %59, %63 : vector<2x8x8xf32>
    "tpu.trace_start"() <{level = 10 : i32, message = "blm,bmd->bld"}> : () -> ()
    %cst_33 = arith.constant dense<0.000000e+00> : vector<2x8x8xf32>
    %65 = tpu.matmul %64, %51, %cst_33 {dimension_numbers = #tpu.dot_dimension_numbers<[2], [1], [1], [2], [0, 0, 0, 1, 1, 2], [0], [0]>} : vector<2x8x8xf32>, vector<2x8x8xf32>, vector<2x8x8xf32> -> vector<2x8x8xf32>
    "tpu.trace_stop"() : () -> ()
    %66 = vector.shape_cast %65 : vector<2x8x8xf32> to vector<16x8xf32>
    %c8 = arith.constant 8 : index
    %c0_34 = arith.constant 0 : index
    %67 = vector.load %arg9[%c8, %c0_34] : memref<32x32xf32, #tpu.memory_space<vmem>>, vector<8x32xf32>
    %cst_35 = arith.constant dense<0.000000e+00> : vector<16x32xf32>
    %68 = tpu.matmul %66, %67, %cst_35 {dimension_numbers = #tpu.dot_dimension_numbers<[1], [0], [0], [1], [0, 0, 1, 1], [], []>} : vector<16x8xf32>, vector<8x32xf32>, vector<16x32xf32> -> vector<16x32xf32>
    %69 = arith.addf %45, %68 : vector<16x32xf32>
    %70 = vector.extract_strided_slice %12 {offsets = [0, 16], sizes = [16, 8], strides = [1, 1]} : vector<16x32xf32> to vector<16x8xf32>
    %71 = vector.shape_cast %70 : vector<16x8xf32> to vector<2x8x8xf32>
    %72 = vector.extract_strided_slice %17 {offsets = [0, 16], sizes = [16, 8], strides = [1, 1]} : vector<16x32xf32> to vector<16x8xf32>
    %73 = vector.shape_cast %72 : vector<16x8xf32> to vector<2x8x8xf32>
    %74 = vector.extract_strided_slice %22 {offsets = [0, 16], sizes = [16, 8], strides = [1, 1]} : vector<16x32xf32> to vector<16x8xf32>
    %75 = vector.shape_cast %74 : vector<16x8xf32> to vector<2x8x8xf32>
    "tpu.trace_start"() <{level = 10 : i32, message = "bld,bmd->blm"}> : () -> ()
    %cst_36 = arith.constant dense<0.000000e+00> : vector<2x8x8xf32>
    %76 = tpu.matmul %71, %73, %cst_36 {dimension_numbers = #tpu.dot_dimension_numbers<[2], [2], [1], [1], [0, 0, 0, 1, 1, 1], [0], [0]>} : vector<2x8x8xf32>, vector<2x8x8xf32>, vector<2x8x8xf32> -> vector<2x8x8xf32>
    %cst_37 = arith.constant -1.000000e+09 : f32
    "tpu.trace_stop"() : () -> ()
    %77 = vector.broadcast %cst_37 : f32 to vector<2x8x8xf32>
    %78 = arith.select %5, %77, %76 : vector<2x8x8xi1>, vector<2x8x8xf32>
    %cst_38 = arith.constant dense<0xFF800000> : vector<2x8xf32>
    %79 = vector.multi_reduction <maximumf>, %78, %cst_38 [2] : vector<2x8x8xf32> to vector<2x8xf32>
    %80 = vector.shape_cast %79 : vector<2x8xf32> to vector<2x8x1xf32>
    %81 = vector.broadcast %80 : vector<2x8x1xf32> to vector<2x8x8xf32>
    %82 = arith.subf %78, %81 : vector<2x8x8xf32>
    %83 = math.exp %82 : vector<2x8x8xf32>
    %cst_39 = arith.constant dense<0.000000e+00> : vector<2x8xf32>
    %84 = vector.multi_reduction <add>, %83, %cst_39 [2] : vector<2x8x8xf32> to vector<2x8xf32>
    %85 = vector.shape_cast %84 : vector<2x8xf32> to vector<2x8x1xf32>
    %86 = tpu.reciprocal %85 {approx = true} : vector<2x8x1xf32> -> vector<2x8x1xf32>
    %87 = vector.broadcast %86 : vector<2x8x1xf32> to vector<2x8x8xf32>
    %88 = arith.mulf %83, %87 : vector<2x8x8xf32>
    "tpu.trace_start"() <{level = 10 : i32, message = "blm,bmd->bld"}> : () -> ()
    %cst_40 = arith.constant dense<0.000000e+00> : vector<2x8x8xf32>
    %89 = tpu.matmul %88, %75, %cst_40 {dimension_numbers = #tpu.dot_dimension_numbers<[2], [1], [1], [2], [0, 0, 0, 1, 1, 2], [0], [0]>} : vector<2x8x8xf32>, vector<2x8x8xf32>, vector<2x8x8xf32> -> vector<2x8x8xf32>
    "tpu.trace_stop"() : () -> ()
    %90 = vector.shape_cast %89 : vector<2x8x8xf32> to vector<16x8xf32>
    %c16 = arith.constant 16 : index
    %c0_41 = arith.constant 0 : index
    %91 = vector.load %arg9[%c16, %c0_41] : memref<32x32xf32, #tpu.memory_space<vmem>>, vector<8x32xf32>
    %cst_42 = arith.constant dense<0.000000e+00> : vector<16x32xf32>
    %92 = tpu.matmul %90, %91, %cst_42 {dimension_numbers = #tpu.dot_dimension_numbers<[1], [0], [0], [1], [0, 0, 1, 1], [], []>} : vector<16x8xf32>, vector<8x32xf32>, vector<16x32xf32> -> vector<16x32xf32>
    %93 = arith.addf %69, %92 : vector<16x32xf32>
    %94 = vector.extract_strided_slice %12 {offsets = [0, 24], sizes = [16, 8], strides = [1, 1]} : vector<16x32xf32> to vector<16x8xf32>
    %95 = vector.shape_cast %94 : vector<16x8xf32> to vector<2x8x8xf32>
    %96 = vector.extract_strided_slice %17 {offsets = [0, 24], sizes = [16, 8], strides = [1, 1]} : vector<16x32xf32> to vector<16x8xf32>
    %97 = vector.shape_cast %96 : vector<16x8xf32> to vector<2x8x8xf32>
    %98 = vector.extract_strided_slice %22 {offsets = [0, 24], sizes = [16, 8], strides = [1, 1]} : vector<16x32xf32> to vector<16x8xf32>
    %99 = vector.shape_cast %98 : vector<16x8xf32> to vector<2x8x8xf32>
    "tpu.trace_start"() <{level = 10 : i32, message = "bld,bmd->blm"}> : () -> ()
    %cst_43 = arith.constant dense<0.000000e+00> : vector<2x8x8xf32>
    %100 = tpu.matmul %95, %97, %cst_43 {dimension_numbers = #tpu.dot_dimension_numbers<[2], [2], [1], [1], [0, 0, 0, 1, 1, 1], [0], [0]>} : vector<2x8x8xf32>, vector<2x8x8xf32>, vector<2x8x8xf32> -> vector<2x8x8xf32>
    %cst_44 = arith.constant -1.000000e+09 : f32
    "tpu.trace_stop"() : () -> ()
    %101 = vector.broadcast %cst_44 : f32 to vector<2x8x8xf32>
    %102 = arith.select %5, %101, %100 : vector<2x8x8xi1>, vector<2x8x8xf32>
    %cst_45 = arith.constant dense<0xFF800000> : vector<2x8xf32>
    %103 = vector.multi_reduction <maximumf>, %102, %cst_45 [2] : vector<2x8x8xf32> to vector<2x8xf32>
    %104 = vector.shape_cast %103 : vector<2x8xf32> to vector<2x8x1xf32>
    %105 = vector.broadcast %104 : vector<2x8x1xf32> to vector<2x8x8xf32>
    %106 = arith.subf %102, %105 : vector<2x8x8xf32>
    %107 = math.exp %106 : vector<2x8x8xf32>
    %cst_46 = arith.constant dense<0.000000e+00> : vector<2x8xf32>
    %108 = vector.multi_reduction <add>, %107, %cst_46 [2] : vector<2x8x8xf32> to vector<2x8xf32>
    %109 = vector.shape_cast %108 : vector<2x8xf32> to vector<2x8x1xf32>
    %110 = tpu.reciprocal %109 {approx = true} : vector<2x8x1xf32> -> vector<2x8x1xf32>
    %111 = vector.broadcast %110 : vector<2x8x1xf32> to vector<2x8x8xf32>
    %112 = arith.mulf %107, %111 : vector<2x8x8xf32>
    "tpu.trace_start"() <{level = 10 : i32, message = "blm,bmd->bld"}> : () -> ()
    %cst_47 = arith.constant dense<0.000000e+00> : vector<2x8x8xf32>
    %113 = tpu.matmul %112, %99, %cst_47 {dimension_numbers = #tpu.dot_dimension_numbers<[2], [1], [1], [2], [0, 0, 0, 1, 1, 2], [0], [0]>} : vector<2x8x8xf32>, vector<2x8x8xf32>, vector<2x8x8xf32> -> vector<2x8x8xf32>
    "tpu.trace_stop"() : () -> ()
    %114 = vector.shape_cast %113 : vector<2x8x8xf32> to vector<16x8xf32>
    %c24 = arith.constant 24 : index
    %c0_48 = arith.constant 0 : index
    %115 = vector.load %arg9[%c24, %c0_48] : memref<32x32xf32, #tpu.memory_space<vmem>>, vector<8x32xf32>
    %cst_49 = arith.constant dense<0.000000e+00> : vector<16x32xf32>
    %116 = tpu.matmul %114, %115, %cst_49 {dimension_numbers = #tpu.dot_dimension_numbers<[1], [0], [0], [1], [0, 0, 1, 1], [], []>} : vector<16x8xf32>, vector<8x32xf32>, vector<16x32xf32> -> vector<16x32xf32>
    %117 = arith.addf %93, %116 : vector<16x32xf32>
    %c0_50 = arith.constant 0 : index
    %c0_51 = arith.constant 0 : index
    %118 = vector.load %arg10[%c0_50, %c0_51] : memref<1x32xf32, #tpu.memory_space<vmem>>, vector<1x32xf32>
    %119 = vector.broadcast %118 : vector<1x32xf32> to vector<16x32xf32>
    %120 = arith.addf %117, %119 : vector<16x32xf32>
    %121 = arith.addf %1, %120 : vector<16x32xf32>
    %c0_52 = arith.constant 0 : index
    %c0_53 = arith.constant 0 : index
    %122 = vector.load %arg11[%c0_52, %c0_53] : memref<1x32xf32, #tpu.memory_space<vmem>>, vector<1x32xf32>
    %c0_54 = arith.constant 0 : index
    %c0_55 = arith.constant 0 : index
    %123 = vector.load %arg12[%c0_54, %c0_55] : memref<1x32xf32, #tpu.memory_space<vmem>>, vector<1x32xf32>
    %cst_56 = arith.constant dense<0.000000e+00> : vector<16xf32>
    %124 = vector.multi_reduction <add>, %121, %cst_56 [1] : vector<16x32xf32> to vector<16xf32>
    %125 = vector.shape_cast %124 : vector<16xf32> to vector<16x1xf32>
    %cst_57 = arith.constant 3.200000e+01 : f32
    %126 = vector.broadcast %cst_57 : f32 to vector<16x1xf32>
    %127 = arith.divf %125, %126 : vector<16x1xf32>
    %128 = vector.broadcast %127 : vector<16x1xf32> to vector<16x32xf32>
    %129 = arith.subf %121, %128 : vector<16x32xf32>
    %130 = arith.mulf %129, %129 : vector<16x32xf32>
    %cst_58 = arith.constant dense<0.000000e+00> : vector<16xf32>
    %131 = vector.multi_reduction <add>, %130, %cst_58 [1] : vector<16x32xf32> to vector<16xf32>
    %132 = vector.shape_cast %131 : vector<16xf32> to vector<16x1xf32>
    %cst_59 = arith.constant 3.200000e+01 : f32
    %133 = vector.broadcast %cst_59 : f32 to vector<16x1xf32>
    %134 = arith.divf %132, %133 : vector<16x1xf32>
    %135 = vector.broadcast %127 : vector<16x1xf32> to vector<16x32xf32>
    %136 = arith.subf %121, %135 : vector<16x32xf32>
    %cst_60 = arith.constant 9.99999974E-6 : f32
    %137 = vector.broadcast %cst_60 : f32 to vector<16x1xf32>
    %138 = arith.addf %134, %137 : vector<16x1xf32>
    %139 = math.rsqrt %138 : vector<16x1xf32>
    %140 = vector.broadcast %139 : vector<16x1xf32> to vector<16x32xf32>
    %141 = arith.mulf %136, %140 : vector<16x32xf32>
    %142 = vector.broadcast %122 : vector<1x32xf32> to vector<16x32xf32>
    %143 = arith.mulf %141, %142 : vector<16x32xf32>
    %144 = vector.broadcast %123 : vector<1x32xf32> to vector<16x32xf32>
    %145 = arith.addf %143, %144 : vector<16x32xf32>
    %c0_61 = arith.constant 0 : index
    %c0_62 = arith.constant 0 : index
    %146 = vector.load %arg13[%c0_61, %c0_62] : memref<32x64xf32, #tpu.memory_space<vmem>>, vector<32x64xf32>
    %cst_63 = arith.constant dense<0.000000e+00> : vector<16x64xf32>
    %147 = tpu.matmul %145, %146, %cst_63 {dimension_numbers = #tpu.dot_dimension_numbers<[1], [0], [0], [1], [0, 0, 1, 1], [], []>} : vector<16x32xf32>, vector<32x64xf32>, vector<16x64xf32> -> vector<16x64xf32>
    %c0_64 = arith.constant 0 : index
    %c0_65 = arith.constant 0 : index
    %148 = vector.load %arg14[%c0_64, %c0_65] : memref<1x64xf32, #tpu.memory_space<vmem>>, vector<1x64xf32>
    %149 = vector.broadcast %148 : vector<1x64xf32> to vector<16x64xf32>
    %150 = arith.addf %147, %149 : vector<16x64xf32>
    %cst_66 = arith.constant 0.000000e+00 : f32
    %151 = vector.broadcast %cst_66 : f32 to vector<16x64xf32>
    %152 = arith.maximumf %150, %151 : vector<16x64xf32>
    %c0_67 = arith.constant 0 : index
    %c0_68 = arith.constant 0 : index
    %153 = vector.load %arg15[%c0_67, %c0_68] : memref<64x32xf32, #tpu.memory_space<vmem>>, vector<64x32xf32>
    %cst_69 = arith.constant dense<0.000000e+00> : vector<16x32xf32>
    %154 = tpu.matmul %152, %153, %cst_69 {dimension_numbers = #tpu.dot_dimension_numbers<[1], [0], [0], [1], [0, 0, 1, 1], [], []>} : vector<16x64xf32>, vector<64x32xf32>, vector<16x32xf32> -> vector<16x32xf32>
    %c0_70 = arith.constant 0 : index
    %c0_71 = arith.constant 0 : index
    %155 = vector.load %arg16[%c0_70, %c0_71] : memref<1x32xf32, #tpu.memory_space<vmem>>, vector<1x32xf32>
    %156 = vector.broadcast %155 : vector<1x32xf32> to vector<16x32xf32>
    %157 = arith.addf %154, %156 : vector<16x32xf32>
    %158 = arith.addf %145, %157 : vector<16x32xf32>
    %c0_72 = arith.constant 0 : index
    %c0_73 = arith.constant 0 : index
    %159 = vector.load %arg17[%c0_72, %c0_73] : memref<1x32xf32, #tpu.memory_space<vmem>>, vector<1x32xf32>
    %c0_74 = arith.constant 0 : index
    %c0_75 = arith.constant 0 : index
    %160 = vector.load %arg18[%c0_74, %c0_75] : memref<1x32xf32, #tpu.memory_space<vmem>>, vector<1x32xf32>
    %cst_76 = arith.constant dense<0.000000e+00> : vector<16xf32>
    %161 = vector.multi_reduction <add>, %158, %cst_76 [1] : vector<16x32xf32> to vector<16xf32>
    %162 = vector.shape_cast %161 : vector<16xf32> to vector<16x1xf32>
    %cst_77 = arith.constant 3.200000e+01 : f32
    %163 = vector.broadcast %cst_77 : f32 to vector<16x1xf32>
    %164 = arith.divf %162, %163 : vector<16x1xf32>
    %165 = vector.broadcast %164 : vector<16x1xf32> to vector<16x32xf32>
    %166 = arith.subf %158, %165 : vector<16x32xf32>
    %167 = arith.mulf %166, %166 : vector<16x32xf32>
    %cst_78 = arith.constant dense<0.000000e+00> : vector<16xf32>
    %168 = vector.multi_reduction <add>, %167, %cst_78 [1] : vector<16x32xf32> to vector<16xf32>
    %169 = vector.shape_cast %168 : vector<16xf32> to vector<16x1xf32>
    %cst_79 = arith.constant 3.200000e+01 : f32
    %170 = vector.broadcast %cst_79 : f32 to vector<16x1xf32>
    %171 = arith.divf %169, %170 : vector<16x1xf32>
    %172 = vector.broadcast %164 : vector<16x1xf32> to vector<16x32xf32>
    %173 = arith.subf %158, %172 : vector<16x32xf32>
    %cst_80 = arith.constant 9.99999974E-6 : f32
    %174 = vector.broadcast %cst_80 : f32 to vector<16x1xf32>
    %175 = arith.addf %171, %174 : vector<16x1xf32>
    %176 = math.rsqrt %175 : vector<16x1xf32>
    %177 = vector.broadcast %176 : vector<16x1xf32> to vector<16x32xf32>
    %178 = arith.mulf %173, %177 : vector<16x32xf32>
    %179 = vector.broadcast %159 : vector<1x32xf32> to vector<16x32xf32>
    %180 = arith.mulf %178, %179 : vector<16x32xf32>
    %181 = vector.broadcast %160 : vector<1x32xf32> to vector<16x32xf32>
    %182 = arith.addf %180, %181 : vector<16x32xf32>
    %183 = vector.shape_cast %182 : vector<16x32xf32> to vector<2x8x32xf32>
    %c0_81 = arith.constant 0 : index
    %c0_82 = arith.constant 0 : index
    %c0_83 = arith.constant 0 : index
    %184 = vector.load %arg19[%c0_81, %c0_82, %c0_83] : memref<2x8x32xf32, #tpu.memory_space<vmem>>, vector<2x8x32xf32>
    tpu.vector_store %arg19[%c0_81, %c0_82, %c0_83], %183 {strides = array<i32>} : memref<2x8x32xf32, #tpu.memory_space<vmem>>, vector<2x8x32xf32>,
    return
  }
  func.func @transform_0(%arg0: i32) -> (i32, i32, i32) {
    %c0_i32 = arith.constant 0 : i32
    %c0_i32_0 = arith.constant 0 : i32
    %c0_i32_1 = arith.constant 0 : i32
    return %arg0, %c0_i32, %c0_i32_0 : i32, i32, i32
  }
  func.func @transform_1(%arg0: i32) -> (i32, i32, i32) {
    %c0_i32 = arith.constant 0 : i32
    %c0_i32_0 = arith.constant 0 : i32
    %c0_i32_1 = arith.constant 0 : i32
    return %arg0, %c0_i32, %c0_i32_0 : i32, i32, i32
  }
  func.func @transform_2(%arg0: i32) -> (i32, i32) {
    %c0_i32 = arith.constant 0 : i32
    %c0_i32_0 = arith.constant 0 : i32
    %c0_i32_1 = arith.constant 0 : i32
    return %c0_i32, %c0_i32_0 : i32, i32
  }
  func.func @transform_3(%arg0: i32) -> (i32, i32) {
    %c0_i32 = arith.constant 0 : i32
    %c0_i32_0 = arith.constant 0 : i32
    %c0_i32_1 = arith.constant 0 : i32
    return %c0_i32, %c0_i32_0 : i32, i32
  }
  func.func @transform_4(%arg0: i32) -> (i32, i32) {
    %c0_i32 = arith.constant 0 : i32
    %c0_i32_0 = arith.constant 0 : i32
    %c0_i32_1 = arith.constant 0 : i32
    return %c0_i32, %c0_i32_0 : i32, i32
  }
  func.func @transform_5(%arg0: i32) -> (i32, i32) {
    %c0_i32 = arith.constant 0 : i32
    %c0_i32_0 = arith.constant 0 : i32
    %c0_i32_1 = arith.constant 0 : i32
    return %c0_i32, %c0_i32_0 : i32, i32
  }
  func.func @transform_6(%arg0: i32) -> (i32, i32) {
    %c0_i32 = arith.constant 0 : i32
    %c0_i32_0 = arith.constant 0 : i32
    %c0_i32_1 = arith.constant 0 : i32
    return %c0_i32, %c0_i32_0 : i32, i32
  }
  func.func @transform_7(%arg0: i32) -> (i32, i32) {
    %c0_i32 = arith.constant 0 : i32
    %c0_i32_0 = arith.constant 0 : i32
    %c0_i32_1 = arith.constant 0 : i32
    return %c0_i32, %c0_i32_0 : i32, i32
  }
  func.func @transform_8(%arg0: i32) -> (i32, i32) {
    %c0_i32 = arith.constant 0 : i32
    %c0_i32_0 = arith.constant 0 : i32
    %c0_i32_1 = arith.constant 0 : i32
    return %c0_i32, %c0_i32_0 : i32, i32
  }
  func.func @transform_9(%arg0: i32) -> (i32, i32) {
    %c0_i32 = arith.constant 0 : i32
    %c0_i32_0 = arith.constant 0 : i32
    %c0_i32_1 = arith.constant 0 : i32
    return %c0_i32, %c0_i32_0 : i32, i32
  }
  func.func @transform_10(%arg0: i32) -> (i32, i32) {
    %c0_i32 = arith.constant 0 : i32
    %c0_i32_0 = arith.constant 0 : i32
    %c0_i32_1 = arith.constant 0 : i32
    return %c0_i32, %c0_i32_0 : i32, i32
  }
  func.func @transform_11(%arg0: i32) -> (i32, i32) {
    %c0_i32 = arith.constant 0 : i32
    %c0_i32_0 = arith.constant 0 : i32
    %c0_i32_1 = arith.constant 0 : i32
    return %c0_i32, %c0_i32_0 : i32, i32
  }
  func.func @transform_12(%arg0: i32) -> (i32, i32) {
    %c0_i32 = arith.constant 0 : i32
    %c0_i32_0 = arith.constant 0 : i32
    %c0_i32_1 = arith.constant 0 : i32
    return %c0_i32, %c0_i32_0 : i32, i32
  }
  func.func @transform_13(%arg0: i32) -> (i32, i32) {
    %c0_i32 = arith.constant 0 : i32
    %c0_i32_0 = arith.constant 0 : i32
    %c0_i32_1 = arith.constant 0 : i32
    return %c0_i32, %c0_i32_0 : i32, i32
  }
  func.func @transform_14(%arg0: i32) -> (i32, i32) {
    %c0_i32 = arith.constant 0 : i32
    %c0_i32_0 = arith.constant 0 : i32
    %c0_i32_1 = arith.constant 0 : i32
    return %c0_i32, %c0_i32_0 : i32, i32
  }
  func.func @transform_15(%arg0: i32) -> (i32, i32) {
    %c0_i32 = arith.constant 0 : i32
    %c0_i32_0 = arith.constant 0 : i32
    %c0_i32_1 = arith.constant 0 : i32
    return %c0_i32, %c0_i32_0 : i32, i32
  }
  func.func @transform_16(%arg0: i32) -> (i32, i32) {
    %c0_i32 = arith.constant 0 : i32
    %c0_i32_0 = arith.constant 0 : i32
    %c0_i32_1 = arith.constant 0 : i32
    return %c0_i32, %c0_i32_0 : i32, i32
  }
  func.func @transform_17(%arg0: i32) -> (i32, i32) {
    %c0_i32 = arith.constant 0 : i32
    %c0_i32_0 = arith.constant 0 : i32
    %c0_i32_1 = arith.constant 0 : i32
    return %c0_i32, %c0_i32_0 : i32, i32
  }
  func.func @transform_18(%arg0: i32) -> (i32, i32, i32) {
    %c0_i32 = arith.constant 0 : i32
    %c0_i32_0 = arith.constant 0 : i32
    %c0_i32_1 = arith.constant 0 : i32
    return %arg0, %c0_i32, %c0_i32_0 : i32, i32, i32
  }
}

</mosaic_0001>

<llo_original>
// kernel: tpu_custom_call.1
$region0: #{tpu_custom_call.1}
  #allocation0 [shape = 'u32[]', space=smem, size = 0x4, offset = 0x4, fixed_abs, tag = 'smem constant byte address 0x4 - core index']
  #allocation1 [shape = 'u32[72,128]{1,0:T(1,128)}', space=vmem, size = 0x9000, scoped, tag = 'internal scratch']
  %s0 = inlined_call_operand.hbm [shape: f32[2,8,32], index: 0, kind: input, shape index: {}]
  %s1 = inlined_call_operand.hbm [shape: s8[2,8,8], index: 1, kind: input, shape index: {}]
  %s2 = inlined_call_operand.vmem [shape: f32[32,32], index: 2, kind: input, shape index: {}]
  %s3 = inlined_call_operand.vmem [shape: f32[1,32], index: 3, kind: input, shape index: {}]
  %s4 = inlined_call_operand.vmem [shape: f32[32,32], index: 4, kind: input, shape index: {}]
  %s5 = inlined_call_operand.vmem [shape: f32[1,32], index: 5, kind: input, shape index: {}]
  %s6 = inlined_call_operand.vmem [shape: f32[32,32], index: 6, kind: input, shape index: {}]
  %s7 = inlined_call_operand.vmem [shape: f32[1,32], index: 7, kind: input, shape index: {}]
  %s8 = inlined_call_operand.hbm [shape: f32[32,32], index: 8, kind: input, shape index: {}]
  %s9 = inlined_call_operand.vmem [shape: f32[1,32], index: 9, kind: input, shape index: {}]
  %s10 = inlined_call_operand.vmem [shape: f32[1,32], index: 10, kind: input, shape index: {}]
  %s11 = inlined_call_operand.vmem [shape: f32[1,32], index: 11, kind: input, shape index: {}]
  %s12 = inlined_call_operand.hbm [shape: f32[32,64], index: 12, kind: input, shape index: {}]
  %s13 = inlined_call_operand.vmem [shape: f32[1,64], index: 13, kind: input, shape index: {}]
  %s14 = inlined_call_operand.vmem [shape: f32[64,32], index: 14, kind: input, shape index: {}]
  %s15 = inlined_call_operand.vmem [shape: f32[1,32], index: 15, kind: input, shape index: {}]
  %s16 = inlined_call_operand.vmem [shape: f32[1,32], index: 16, kind: input, shape index: {}]
  %s17 = inlined_call_operand.vmem [shape: f32[1,32], index: 17, kind: input, shape index: {}]
  %s18 = inlined_call_operand.hbm [shape: f32[2,8,32], index: 18, kind: output, shape index: {}]
  %s19 = sld [smem:[#allocation0]]
  $region98: #{tpu_custom_call.1} parent=0
    _
  %s21 = ssub.s32 1, %s19
  %s22 = scalar_select 0, %s21, %s19
  $region1: #{tpu_custom_call.1} parent=0
    #allocation2 [shape = 'u8[8192]{0}', space=vmem, size = 0x2000, scoped, tag = 'input window, operand 0, single buffered']
    #allocation3 [shape = 's32[1]{0}', space=sflag, size = 0x4, scoped, tag = 'scoped memory for tpu_custom_call.1']
    #allocation4 [shape = 's32[1]{0}', space=sflag, size = 0x4, scoped, tag = 'scoped memory for tpu_custom_call.1']
    #allocation5 [shape = 'u8[2048]{0}', space=vmem, size = 0x800, scoped, tag = 'input window, operand 1, single buffered']
    #allocation6 [shape = 's32[1]{0}', space=sflag, size = 0x4, scoped, tag = 'scoped memory for tpu_custom_call.1']
    #allocation7 [shape = 'u8[16384]{0}', space=vmem, size = 0x4000, scoped, tag = 'input window, operand 8, single buffered']
    #allocation8 [shape = 'u8[16384]{0}', space=vmem, size = 0x4000, scoped, tag = 'input window, operand 12, single buffered']
    #allocation9 [shape = 's32[1]{0}', space=sflag, size = 0x4, scoped, tag = 'scoped memory for tpu_custom_call.1']
    #allocation10 [shape = 'u8[8192]{0}', space=vmem, size = 0x2000, scoped, tag = 'output window, operand 0, single buffered']
    %23 = vsyncpa [#allocation3], 0
    %24 = vsyncpa [#allocation6], 0
    %25 = vsyncpa [#allocation9], 0
    %26 = vsyncpa [#allocation4], 0
    // Predicated region
    $region2: #{tpu_custom_call.1} parent=1 // pred_check
      _
    $region3: #{tpu_custom_call.1} parent=1 // pred_check_branch
      %28 = sbr.rel (0) target = $region5
    $region4: #{tpu_custom_call.1} parent=1 // pred_region
      %30 = vsyncadd [#allocation3], 0
      %s31 = sshll.u32 %s0, 4
      %s32 = int_to_ptr.hbm [resolvable:$true] %s31
      %s33 = sshll.u32 [#allocation2], 4
      %s34 = int_to_ptr.vmem [resolvable:$true] %s33
      %39 = dma.hbm_to_vmem [thread:$0]  %s32, 256, %s34, [#allocation3], 128, 128, 8
    $region5: #{tpu_custom_call.1} parent=1 // pred_fallthru
      _
    // Predicated region
    $region6: #{tpu_custom_call.1} parent=1 // pred_check
      _
    $region7: #{tpu_custom_call.1} parent=1 // pred_check_branch
      %41 = sbr.rel (0) target = $region9
    $region8: #{tpu_custom_call.1} parent=1 // pred_region
      %43 = vsyncadd [#allocation6], 0
      %s44 = sshll.u32 %s1, 4
      %s45 = int_to_ptr.hbm [resolvable:$true] %s44
      %s46 = sshll.u32 [#allocation5], 4
      %s47 = int_to_ptr.vmem [resolvable:$true] %s46
      %52 = dma.hbm_to_vmem [thread:$0]  %s45, 64, %s47, [#allocation6], 32, 32, 2
    $region9: #{tpu_custom_call.1} parent=1 // pred_fallthru
      _
    // Predicated region
    $region10: #{tpu_custom_call.1} parent=1 // pred_check
      _
    $region11: #{tpu_custom_call.1} parent=1 // pred_check_branch
      %54 = sbr.rel (0) target = $region13
    $region12: #{tpu_custom_call.1} parent=1 // pred_region
      _
    $region13: #{tpu_custom_call.1} parent=1 // pred_fallthru
      _
    // Predicated region
    $region14: #{tpu_custom_call.1} parent=1 // pred_check
      _
    $region15: #{tpu_custom_call.1} parent=1 // pred_check_branch
      %56 = sbr.rel (0) target = $region17
    $region16: #{tpu_custom_call.1} parent=1 // pred_region
      _
    $region17: #{tpu_custom_call.1} parent=1 // pred_fallthru
      _
    // Predicated region
    $region18: #{tpu_custom_call.1} parent=1 // pred_check
      _
    $region19: #{tpu_custom_call.1} parent=1 // pred_check_branch
      %58 = sbr.rel (0) target = $region21
    $region20: #{tpu_custom_call.1} parent=1 // pred_region
      _
    $region21: #{tpu_custom_call.1} parent=1 // pred_fallthru
      _
    // Predicated region
    $region22: #{tpu_custom_call.1} parent=1 // pred_check
      _
    $region23: #{tpu_custom_call.1} parent=1 // pred_check_branch
      %60 = sbr.rel (0) target = $region25
    $region24: #{tpu_custom_call.1} parent=1 // pred_region
      _
    $region25: #{tpu_custom_call.1} parent=1 // pred_fallthru
      _
    // Predicated region
    $region26: #{tpu_custom_call.1} parent=1 // pred_check
      _
    $region27: #{tpu_custom_call.1} parent=1 // pred_check_branch
      %62 = sbr.rel (0) target = $region29
    $region28: #{tpu_custom_call.1} parent=1 // pred_region
      _
    $region29: #{tpu_custom_call.1} parent=1 // pred_fallthru
      _
    // Predicated region
    $region30: #{tpu_custom_call.1} parent=1 // pred_check
      _
    $region31: #{tpu_custom_call.1} parent=1 // pred_check_branch
      %64 = sbr.rel (0) target = $region33
    $region32: #{tpu_custom_call.1} parent=1 // pred_region
      _
    $region33: #{tpu_custom_call.1} parent=1 // pred_fallthru
      _
    // Predicated region
    $region34: #{tpu_custom_call.1} parent=1 // pred_check
      _
    $region35: #{tpu_custom_call.1} parent=1 // pred_check_branch
      %66 = sbr.rel (0) target = $region37
    $region36: #{tpu_custom_call.1} parent=1 // pred_region
      %68 = vsyncadd [#allocation6], 0
      %s69 = sshll.u32 %s8, 4
      %s70 = int_to_ptr.hbm [resolvable:$true] %s69
      %s71 = sshll.u32 [#allocation7], 4
      %s72 = int_to_ptr.vmem [resolvable:$true] %s71
      %77 = dma.hbm_to_vmem [thread:$0]  %s70, 512, %s72, [#allocation6], 128, 128, 8
    $region37: #{tpu_custom_call.1} parent=1 // pred_fallthru
      _
    // Predicated region
    $region38: #{tpu_custom_call.1} parent=1 // pred_check
      _
    $region39: #{tpu_custom_call.1} parent=1 // pred_check_branch
      %79 = sbr.rel (0) target = $region41
    $region40: #{tpu_custom_call.1} parent=1 // pred_region
      _
    $region41: #{tpu_custom_call.1} parent=1 // pred_fallthru
      _
    // Predicated region
    $region42: #{tpu_custom_call.1} parent=1 // pred_check
      _
    $region43: #{tpu_custom_call.1} parent=1 // pred_check_branch
      %81 = sbr.rel (0) target = $region45
    $region44: #{tpu_custom_call.1} parent=1 // pred_region
      _
    $region45: #{tpu_custom_call.1} parent=1 // pred_fallthru
      _
    // Predicated region
    $region46: #{tpu_custom_call.1} parent=1 // pred_check
      _
    $region47: #{tpu_custom_call.1} parent=1 // pred_check_branch
      %83 = sbr.rel (0) target = $region49
    $region48: #{tpu_custom_call.1} parent=1 // pred_region
      _
    $region49: #{tpu_custom_call.1} parent=1 // pred_fallthru
      _
    // Predicated region
    $region50: #{tpu_custom_call.1} parent=1 // pred_check
      _
    $region51: #{tpu_custom_call.1} parent=1 // pred_check_branch
      %85 = sbr.rel (0) target = $region53
    $region52: #{tpu_custom_call.1} parent=1 // pred_region
      %87 = vsyncadd [#allocation9], 0
      %s88 = sshll.u32 %s12, 4
      %s89 = int_to_ptr.hbm [resolvable:$true] %s88
      %s90 = sshll.u32 [#allocation8], 4
      %s91 = int_to_ptr.vmem [resolvable:$true] %s90
      %96 = dma.hbm_to_vmem [thread:$0]  %s89, 512, %s91, [#allocation9], 128, 128, 8
    $region53: #{tpu_custom_call.1} parent=1 // pred_fallthru
      _
    // Predicated region
    $region54: #{tpu_custom_call.1} parent=1 // pred_check
      _
    $region55: #{tpu_custom_call.1} parent=1 // pred_check_branch
      %98 = sbr.rel (0) target = $region57
    $region56: #{tpu_custom_call.1} parent=1 // pred_region
      _
    $region57: #{tpu_custom_call.1} parent=1 // pred_fallthru
      _
    // Predicated region
    $region58: #{tpu_custom_call.1} parent=1 // pred_check
      _
    $region59: #{tpu_custom_call.1} parent=1 // pred_check_branch
      %100 = sbr.rel (0) target = $region61
    $region60: #{tpu_custom_call.1} parent=1 // pred_region
      _
    $region61: #{tpu_custom_call.1} parent=1 // pred_fallthru
      _
    // Predicated region
    $region62: #{tpu_custom_call.1} parent=1 // pred_check
      _
    $region63: #{tpu_custom_call.1} parent=1 // pred_check_branch
      %102 = sbr.rel (0) target = $region65
    $region64: #{tpu_custom_call.1} parent=1 // pred_region
      _
    $region65: #{tpu_custom_call.1} parent=1 // pred_fallthru
      _
    // Predicated region
    $region66: #{tpu_custom_call.1} parent=1 // pred_check
      _
    $region67: #{tpu_custom_call.1} parent=1 // pred_check_branch
      %104 = sbr.rel (0) target = $region69
    $region68: #{tpu_custom_call.1} parent=1 // pred_region
      _
    $region69: #{tpu_custom_call.1} parent=1 // pred_fallthru
      _
    // Predicated region
    $region70: #{tpu_custom_call.1} parent=1 // pred_check
      _
    $region71: #{tpu_custom_call.1} parent=1 // pred_check_branch
      %106 = sbr.rel (0) target = $region73
    $region72: #{tpu_custom_call.1} parent=1 // pred_region
      _
    $region73: #{tpu_custom_call.1} parent=1 // pred_fallthru
      _
    // Predicated region
    $region74: #{tpu_custom_call.1} parent=1 // pred_check
      _
    $region75: #{tpu_custom_call.1} parent=1 // pred_check_branch
      %108 = sbr.rel (0) target = $region77
    $region76: #{tpu_custom_call.1} parent=1 // pred_region
      %110 = dma.done [#allocation3], 256
    $region77: #{tpu_custom_call.1} parent=1 // pred_fallthru
      _
    // Predicated region
    $region78: #{tpu_custom_call.1} parent=1 // pred_check
      _
    $region79: #{tpu_custom_call.1} parent=1 // pred_check_branch
      %112 = sbr.rel (0) target = $region81
    $region80: #{tpu_custom_call.1} parent=1 // pred_region
      %114 = dma.done [#allocation6], 64
    $region81: #{tpu_custom_call.1} parent=1 // pred_fallthru
      _
    // Predicated region
    $region82: #{tpu_custom_call.1} parent=1 // pred_check
      _
    $region83: #{tpu_custom_call.1} parent=1 // pred_check_branch
      %116 = sbr.rel (0) target = $region85
    $region84: #{tpu_custom_call.1} parent=1 // pred_region
      %118 = dma.done [#allocation6], 512
    $region85: #{tpu_custom_call.1} parent=1 // pred_fallthru
      _
    // Predicated region
    $region86: #{tpu_custom_call.1} parent=1 // pred_check
      _
    $region87: #{tpu_custom_call.1} parent=1 // pred_check_branch
      %120 = sbr.rel (0) target = $region89
    $region88: #{tpu_custom_call.1} parent=1 // pred_region
      %122 = dma.done [#allocation9], 512
    $region89: #{tpu_custom_call.1} parent=1 // pred_fallthru
      _
    %v123 = vld [vmem:[#allocation2] sm:$0xff]
    %v124 = vld [vmem:[#allocation2 + $0x8] sm:$0xff]
    %v125 = vld [vmem:[#allocation5] sm:$0x3]
    %v126 = vld [vmem:[#allocation5 + $0x2] sm:$0x3]
    %v127 = vunpack.c.0.s8 %v125
    %v128 = vunpack.c.0.s8 %v126
    %v129 = vcvt.s32.f32 %v127
    %v130 = vcvt.s32.f32 %v128
    %vm131 = vcmp.eq.f32.partialorder %v129, 0.0
    %vm132 = vcmp.eq.f32.partialorder %v130, 0.0
    %v133 = vld [vmem:[%s2] sm:$0xff]
    %v134 = vld [vmem:[%s2 + $0x8] sm:$0xff]
    %v135 = vld [vmem:[%s2 + $0x10] sm:$0xff]
    %v136 = vld [vmem:[%s2 + $0x18] sm:$0xff]
    %v137 = vld [vmem:[%s3] sm:$0x1]
    %v139 = vperm.slane %v137, 0
    %vm141 = vcmask 261120
    %v143 = vsel %vm141, %v123, 0
    %v146 = vsel %vm141, %v124, 0
    %148 = vmatpush.msra.mxu0 0.0
    %149 = vmatpush.msra.mxu0 0.0
    %150 = vmatpush.msra.mxu0 0.0
    %151 = vmatpush.msra.mxu0 0.0
    %152 = vmatpush.msra.mxu0 0.0
    %153 = vmatpush.msra.mxu0 0.0
    %154 = vmatpush.msra.mxu0 0.0
    %155 = vmatpush.msra.mxu0 0.0
    %156 = vmatpush.msra.mxu0 0.0
    %157 = vmatpush.msra.mxu0 0.0
    %158 = vmatpush.msra.mxu0 0.0
    %159 = vmatpush.msra.mxu0 0.0
    %160 = vmatpush.msra.mxu0 %v136
    %161 = vmatpush.msra.mxu0 %v135
    %162 = vmatpush.msra.mxu0 %v134
    %163 = vmatpush.msra.mxu0 %v133
    %164 = vmatmul.f32.gmra.mxu0 %v143
    %v165 = vpop.f32.mrf.mxu0
    %v166 = vadd.f32 %v139, %v165
    %167 = vmatmul.f32.gmra.mxu0 %v146
    %v168 = vpop.f32.mrf.mxu0
    %v169 = vadd.f32 %v139, %v168
    %170 = vdwg.mxu0
    %v171 = vmul.f32 %v166, 0.35355338
    %v172 = vmul.f32 %v169, 0.35355338
    %v173 = vld [vmem:[%s4] sm:$0xff]
    %v174 = vld [vmem:[%s4 + $0x8] sm:$0xff]
    %v175 = vld [vmem:[%s4 + $0x10] sm:$0xff]
    %v176 = vld [vmem:[%s4 + $0x18] sm:$0xff]
    %v177 = vld [vmem:[%s5] sm:$0x1]
    %v179 = vperm.slane %v177, 0
    %181 = vmatpush.msra.mxu0 0.0
    %182 = vmatpush.msra.mxu0 0.0
    %183 = vmatpush.msra.mxu0 0.0
    %184 = vmatpush.msra.mxu0 0.0
    %185 = vmatpush.msra.mxu0 0.0
    %186 = vmatpush.msra.mxu0 0.0
    %187 = vmatpush.msra.mxu0 0.0
    %188 = vmatpush.msra.mxu0 0.0
    %189 = vmatpush.msra.mxu0 0.0
    %190 = vmatpush.msra.mxu0 0.0
    %191 = vmatpush.msra.mxu0 0.0
    %192 = vmatpush.msra.mxu0 0.0
    %193 = vmatpush.msra.mxu0 %v176
    %194 = vmatpush.msra.mxu0 %v175
    %195 = vmatpush.msra.mxu0 %v174
    %196 = vmatpush.msra.mxu0 %v173
    %197 = vmatmul.f32.gmra.mxu0 %v143
    %v198 = vpop.f32.mrf.mxu0
    %v199 = vadd.f32 %v179, %v198
    %200 = vmatmul.f32.gmra.mxu0 %v146
    %v201 = vpop.f32.mrf.mxu0
    %v202 = vadd.f32 %v179, %v201
    %203 = vdwg.mxu0
    %v204 = vld [vmem:[%s6] sm:$0xff]
    %v205 = vld [vmem:[%s6 + $0x8] sm:$0xff]
    %v206 = vld [vmem:[%s6 + $0x10] sm:$0xff]
    %v207 = vld [vmem:[%s6 + $0x18] sm:$0xff]
    %v208 = vld [vmem:[%s7] sm:$0x1]
    %v210 = vperm.slane %v208, 0
    %212 = vmatpush.msra.mxu0 0.0
    %213 = vmatpush.msra.mxu0 0.0
    %214 = vmatpush.msra.mxu0 0.0
    %215 = vmatpush.msra.mxu0 0.0
    %216 = vmatpush.msra.mxu0 0.0
    %217 = vmatpush.msra.mxu0 0.0
    %218 = vmatpush.msra.mxu0 0.0
    %219 = vmatpush.msra.mxu0 0.0
    %220 = vmatpush.msra.mxu0 0.0
    %221 = vmatpush.msra.mxu0 0.0
    %222 = vmatpush.msra.mxu0 0.0
    %223 = vmatpush.msra.mxu0 0.0
    %224 = vmatpush.msra.mxu0 %v207
    %225 = vmatpush.msra.mxu0 %v206
    %226 = vmatpush.msra.mxu0 %v205
    %227 = vmatpush.msra.mxu0 %v204
    %228 = vmatmul.f32.gmra.mxu0 %v143
    %v229 = vpop.f32.mrf.mxu0
    %v230 = vadd.f32 %v210, %v229
    %231 = vmatmul.f32.gmra.mxu0 %v146
    %v232 = vpop.f32.mrf.mxu0
    %v233 = vadd.f32 %v210, %v232
    %234 = vdwg.mxu0
    %vm235 = vcmask 64512
    %v237 = vsel %vm235, %v171, 0
    %v240 = vsel %vm235, %v199, 0
    %242 = vmatpush.xpose.msra.mxu0 0.0
    %243 = vmatpush.xpose.msra.mxu0 0.0
    %244 = vmatpush.xpose.msra.mxu0 0.0
    %245 = vmatpush.xpose.msra.mxu0 0.0
    %246 = vmatpush.xpose.msra.mxu0 0.0
    %247 = vmatpush.xpose.msra.mxu0 0.0
    %248 = vmatpush.xpose.msra.mxu0 0.0
    %249 = vmatpush.xpose.msra.mxu0 0.0
    %250 = vmatpush.xpose.msra.mxu0 0.0
    %251 = vmatpush.xpose.msra.mxu0 0.0
    %252 = vmatpush.xpose.msra.mxu0 0.0
    %253 = vmatpush.xpose.msra.mxu0 0.0
    %254 = vmatpush.xpose.msra.mxu0 0.0
    %255 = vmatpush.xpose.msra.mxu0 0.0
    %256 = vmatpush.xpose.msra.mxu0 0.0
    %257 = vmatpush.xpose.msra.mxu0 %v240
    %258 = vmatmul.f32.gmra.mxu0 %v237
    %v259 = vpop.f32.mrf.mxu0
    %v260 = vadd.f32 0.0, %v259
    %261 = vdwg.mxu0
    %v263 = vsel %vm235, %v172, 0
    %v266 = vsel %vm235, %v202, 0
    %268 = vmatpush.xpose.msra.mxu0 0.0
    %269 = vmatpush.xpose.msra.mxu0 0.0
    %270 = vmatpush.xpose.msra.mxu0 0.0
    %271 = vmatpush.xpose.msra.mxu0 0.0
    %272 = vmatpush.xpose.msra.mxu0 0.0
    %273 = vmatpush.xpose.msra.mxu0 0.0
    %274 = vmatpush.xpose.msra.mxu0 0.0
    %275 = vmatpush.xpose.msra.mxu0 0.0
    %276 = vmatpush.xpose.msra.mxu0 0.0
    %277 = vmatpush.xpose.msra.mxu0 0.0
    %278 = vmatpush.xpose.msra.mxu0 0.0
    %279 = vmatpush.xpose.msra.mxu0 0.0
    %280 = vmatpush.xpose.msra.mxu0 0.0
    %281 = vmatpush.xpose.msra.mxu0 0.0
    %282 = vmatpush.xpose.msra.mxu0 0.0
    %283 = vmatpush.xpose.msra.mxu0 %v266
    %284 = vmatmul.f32.gmra.mxu0 %v263
    %v285 = vpop.f32.mrf.mxu0
    %v286 = vadd.f32 0.0, %v285
    %287 = vdwg.mxu0
    %v288 = vsel %vm131, -1e+09, %v260
    %v289 = vsel %vm132, -1e+09, %v286
    %v290 = vsel %vm235, %v288, -inf
    %291 = vmax.xlane.f32.xlu0 %v290
    %v292 = vpop.xlane.xlu0 %291
    %v293 = vsel %vm235, %v289, -inf
    %294 = vmax.xlane.f32.xlu0 %v293
    %v295 = vpop.xlane.xlu0 %294
    %v296 = vsub.f32 %v288, %v292
    %v297 = vsub.f32 %v289, %v295
    %v298 = vmul.f32 %v296, 1.442695
    %v299 = vpow.pop %v298
    %v300 = vmul.f32 %v297, 1.442695
    %v301 = vpow.pop %v300
    %v302 = vsel %vm235, %v299, 0.0
    %303 = vadd.xlane.f32.xlu0 %v302
    %v304 = vpop.xlane.xlu0 %303
    %v305 = vsel %vm235, %v301, 0.0
    %306 = vadd.xlane.f32.xlu0 %v305
    %v307 = vpop.xlane.xlu0 %306
    %v308 = vrcp.pop %v304
    %v309 = vrcp.pop %v307
    %v310 = vmul.f32 %v299, %v308
    %v311 = vmul.f32 %v301, %v309
    %v313 = vsel %vm235, %v310, 0
    %315 = vmatpush.msra.mxu0 0.0
    %316 = vmatpush.msra.mxu0 0.0
    %317 = vmatpush.msra.mxu0 0.0
    %318 = vmatpush.msra.mxu0 0.0
    %319 = vmatpush.msra.mxu0 0.0
    %320 = vmatpush.msra.mxu0 0.0
    %321 = vmatpush.msra.mxu0 0.0
    %322 = vmatpush.msra.mxu0 0.0
    %323 = vmatpush.msra.mxu0 0.0
    %324 = vmatpush.msra.mxu0 0.0
    %325 = vmatpush.msra.mxu0 0.0
    %326 = vmatpush.msra.mxu0 0.0
    %327 = vmatpush.msra.mxu0 0.0
    %328 = vmatpush.msra.mxu0 0.0
    %329 = vmatpush.msra.mxu0 0.0
    %330 = vmatpush.msra.mxu0 %v230
    %331 = vmatmul.f32.gmra.mxu0 %v313
    %v332 = vpop.f32.mrf.mxu0
    %v333 = vadd.f32 0.0, %v332
    %334 = vdwg.mxu0
    %v336 = vsel %vm235, %v311, 0
    %338 = vmatpush.msra.mxu0 0.0
    %339 = vmatpush.msra.mxu0 0.0
    %340 = vmatpush.msra.mxu0 0.0
    %341 = vmatpush.msra.mxu0 0.0
    %342 = vmatpush.msra.mxu0 0.0
    %343 = vmatpush.msra.mxu0 0.0
    %344 = vmatpush.msra.mxu0 0.0
    %345 = vmatpush.msra.mxu0 0.0
    %346 = vmatpush.msra.mxu0 0.0
    %347 = vmatpush.msra.mxu0 0.0
    %348 = vmatpush.msra.mxu0 0.0
    %349 = vmatpush.msra.mxu0 0.0
    %350 = vmatpush.msra.mxu0 0.0
    %351 = vmatpush.msra.mxu0 0.0
    %352 = vmatpush.msra.mxu0 0.0
    %353 = vmatpush.msra.mxu0 %v233
    %354 = vmatmul.f32.gmra.mxu0 %v336
    %v355 = vpop.f32.mrf.mxu0
    %v356 = vadd.f32 0.0, %v355
    %357 = vdwg.mxu0
    %v358 = vld [vmem:[#allocation7] sm:$0xff]
    %359 = vrot.lane.b32.xlu0 %v171, 120
    %v360 = vpop.permute.xlu0 %359
    %361 = vrot.lane.b32.xlu0 %v199, 120
    %v362 = vpop.permute.xlu0 %361
    %v363 = vsel %vm235, %v360, 0
    %v365 = vsel %vm235, %v362, 0
    %367 = vmatpush.xpose.msra.mxu0 0.0
    %368 = vmatpush.xpose.msra.mxu0 0.0
    %369 = vmatpush.xpose.msra.mxu0 0.0
    %370 = vmatpush.xpose.msra.mxu0 0.0
    %371 = vmatpush.xpose.msra.mxu0 0.0
    %372 = vmatpush.xpose.msra.mxu0 0.0
    %373 = vmatpush.xpose.msra.mxu0 0.0
    %374 = vmatpush.xpose.msra.mxu0 0.0
    %375 = vmatpush.xpose.msra.mxu0 0.0
    %376 = vmatpush.xpose.msra.mxu0 0.0
    %377 = vmatpush.xpose.msra.mxu0 0.0
    %378 = vmatpush.xpose.msra.mxu0 0.0
    %379 = vmatpush.xpose.msra.mxu0 0.0
    %380 = vmatpush.xpose.msra.mxu0 0.0
    %381 = vmatpush.xpose.msra.mxu0 0.0
    %382 = vmatpush.xpose.msra.mxu0 %v365
    %383 = vmatmul.f32.gmra.mxu0 %v363
    %v384 = vpop.f32.mrf.mxu0
    %v385 = vadd.f32 0.0, %v384
    %386 = vdwg.mxu0
    %387 = vrot.lane.b32.xlu0 %v172, 120
    %v388 = vpop.permute.xlu0 %387
    %389 = vrot.lane.b32.xlu0 %v202, 120
    %v390 = vpop.permute.xlu0 %389
    %v391 = vsel %vm235, %v388, 0
    %v393 = vsel %vm235, %v390, 0
    %395 = vmatpush.xpose.msra.mxu0 0.0
    %396 = vmatpush.xpose.msra.mxu0 0.0
    %397 = vmatpush.xpose.msra.mxu0 0.0
    %398 = vmatpush.xpose.msra.mxu0 0.0
    %399 = vmatpush.xpose.msra.mxu0 0.0
    %400 = vmatpush.xpose.msra.mxu0 0.0
    %401 = vmatpush.xpose.msra.mxu0 0.0
    %402 = vmatpush.xpose.msra.mxu0 0.0
    %403 = vmatpush.xpose.msra.mxu0 0.0
    %404 = vmatpush.xpose.msra.mxu0 0.0
    %405 = vmatpush.xpose.msra.mxu0 0.0
    %406 = vmatpush.xpose.msra.mxu0 0.0
    %407 = vmatpush.xpose.msra.mxu0 0.0
    %408 = vmatpush.xpose.msra.mxu0 0.0
    %409 = vmatpush.xpose.msra.mxu0 0.0
    %410 = vmatpush.xpose.msra.mxu0 %v393
    %411 = vmatmul.f32.gmra.mxu0 %v391
    %v412 = vpop.f32.mrf.mxu0
    %v413 = vadd.f32 0.0, %v412
    %414 = vdwg.mxu0
    %v415 = vsel %vm131, -1e+09, %v385
    %v416 = vsel %vm132, -1e+09, %v413
    %v417 = vsel %vm235, %v415, -inf
    %418 = vmax.xlane.f32.xlu0 %v417
    %v419 = vpop.xlane.xlu0 %418
    %v420 = vsel %vm235, %v416, -inf
    %421 = vmax.xlane.f32.xlu0 %v420
    %v422 = vpop.xlane.xlu0 %421
    %v423 = vsub.f32 %v415, %v419
    %v424 = vsub.f32 %v416, %v422
    %v425 = vmul.f32 %v423, 1.442695
    %v426 = vpow.pop %v425
    %v427 = vmul.f32 %v424, 1.442695
    %v428 = vpow.pop %v427
    %v429 = vsel %vm235, %v426, 0.0
    %430 = vadd.xlane.f32.xlu0 %v429
    %v431 = vpop.xlane.xlu0 %430
    %v432 = vsel %vm235, %v428, 0.0
    %433 = vadd.xlane.f32.xlu0 %v432
    %v434 = vpop.xlane.xlu0 %433
    %v435 = vrcp.pop %v431
    %v436 = vrcp.pop %v434
    %v437 = vmul.f32 %v426, %v435
    %v438 = vmul.f32 %v428, %v436
    %440 = vrot.lane.b32.xlu0 %v230, 120
    %v441 = vpop.permute.xlu0 %440
    %v444 = vsel %vm235, %v437, 0
    %446 = vmatpush.msra.mxu0 0.0
    %447 = vmatpush.msra.mxu0 0.0
    %448 = vmatpush.msra.mxu0 0.0
    %449 = vmatpush.msra.mxu0 0.0
    %450 = vmatpush.msra.mxu0 0.0
    %451 = vmatpush.msra.mxu0 0.0
    %452 = vmatpush.msra.mxu0 0.0
    %453 = vmatpush.msra.mxu0 0.0
    %454 = vmatpush.msra.mxu0 0.0
    %455 = vmatpush.msra.mxu0 0.0
    %456 = vmatpush.msra.mxu0 0.0
    %457 = vmatpush.msra.mxu0 0.0
    %458 = vmatpush.msra.mxu0 0.0
    %459 = vmatpush.msra.mxu0 0.0
    %460 = vmatpush.msra.mxu0 0.0
    %461 = vmatpush.msra.mxu0 %v441
    %462 = vmatmul.f32.gmra.mxu0 %v444
    %v463 = vpop.f32.mrf.mxu0
    %v464 = vadd.f32 0.0, %v463
    %465 = vdwg.mxu0
    %467 = vrot.lane.b32.xlu0 %v233, 120
    %v468 = vpop.permute.xlu0 %467
    %v471 = vsel %vm235, %v438, 0
    %473 = vmatpush.msra.mxu0 0.0
    %474 = vmatpush.msra.mxu0 0.0
    %475 = vmatpush.msra.mxu0 0.0
    %476 = vmatpush.msra.mxu0 0.0
    %477 = vmatpush.msra.mxu0 0.0
    %478 = vmatpush.msra.mxu0 0.0
    %479 = vmatpush.msra.mxu0 0.0
    %480 = vmatpush.msra.mxu0 0.0
    %481 = vmatpush.msra.mxu0 0.0
    %482 = vmatpush.msra.mxu0 0.0
    %483 = vmatpush.msra.mxu0 0.0
    %484 = vmatpush.msra.mxu0 0.0
    %485 = vmatpush.msra.mxu0 0.0
    %486 = vmatpush.msra.mxu0 0.0
    %487 = vmatpush.msra.mxu0 0.0
    %488 = vmatpush.msra.mxu0 %v468
    %489 = vmatmul.f32.gmra.mxu0 %v471
    %v490 = vpop.f32.mrf.mxu0
    %v491 = vadd.f32 0.0, %v490
    %492 = vdwg.mxu0
    %v493 = vld [vmem:[#allocation7 + $0x8] sm:$0xff]
    %v495 = vsel %vm235, %v464, 0
    %v498 = vsel %vm235, %v491, 0
    %500 = vmatpush.msra.mxu0 0.0
    %501 = vmatpush.msra.mxu0 0.0
    %502 = vmatpush.msra.mxu0 0.0
    %503 = vmatpush.msra.mxu0 0.0
    %504 = vmatpush.msra.mxu0 0.0
    %505 = vmatpush.msra.mxu0 0.0
    %506 = vmatpush.msra.mxu0 0.0
    %507 = vmatpush.msra.mxu0 0.0
    %508 = vmatpush.msra.mxu0 0.0
    %509 = vmatpush.msra.mxu0 0.0
    %510 = vmatpush.msra.mxu0 0.0
    %511 = vmatpush.msra.mxu0 0.0
    %512 = vmatpush.msra.mxu0 0.0
    %513 = vmatpush.msra.mxu0 0.0
    %514 = vmatpush.msra.mxu0 0.0
    %515 = vmatpush.msra.mxu0 %v493
    %516 = vmatmul.f32.gmra.mxu0 %v495
    %v517 = vpop.f32.mrf.mxu0
    %v518 = vadd.f32 0.0, %v517
    %519 = vmatmul.f32.gmra.mxu0 %v498
    %v520 = vpop.f32.mrf.mxu0
    %v521 = vadd.f32 0.0, %v520
    %522 = vdwg.mxu0
    %v524 = vsel %vm235, %v333, 0
    %v527 = vsel %vm235, %v356, 0
    %529 = vmatpush.msra.mxu0 0.0
    %530 = vmatpush.msra.mxu0 0.0
    %531 = vmatpush.msra.mxu0 0.0
    %532 = vmatpush.msra.mxu0 0.0
    %533 = vmatpush.msra.mxu0 0.0
    %534 = vmatpush.msra.mxu0 0.0
    %535 = vmatpush.msra.mxu0 0.0
    %536 = vmatpush.msra.mxu0 0.0
    %537 = vmatpush.msra.mxu0 0.0
    %538 = vmatpush.msra.mxu0 0.0
    %539 = vmatpush.msra.mxu0 0.0
    %540 = vmatpush.msra.mxu0 0.0
    %541 = vmatpush.msra.mxu0 0.0
    %542 = vmatpush.msra.mxu0 0.0
    %543 = vmatpush.msra.mxu0 0.0
    %544 = vmatpush.msra.mxu0 %v358
    %545 = vmatmul.f32.gmra.mxu0 %v524
    %v546 = vpop.f32.mrf.mxu0
    %v547 = vadd.f32 %v518, %v546
    %548 = vmatmul.f32.gmra.mxu0 %v527
    %v549 = vpop.f32.mrf.mxu0
    %v550 = vadd.f32 %v521, %v549
    %551 = vdwg.mxu0
    %552 = vrot.lane.b32.xlu0 %v171, 112
    %v553 = vpop.permute.xlu0 %552
    %554 = vrot.lane.b32.xlu0 %v199, 112
    %v555 = vpop.permute.xlu0 %554
    %v556 = vsel %vm235, %v553, 0
    %v558 = vsel %vm235, %v555, 0
    %560 = vmatpush.xpose.msra.mxu0 0.0
    %561 = vmatpush.xpose.msra.mxu0 0.0
    %562 = vmatpush.xpose.msra.mxu0 0.0
    %563 = vmatpush.xpose.msra.mxu0 0.0
    %564 = vmatpush.xpose.msra.mxu0 0.0
    %565 = vmatpush.xpose.msra.mxu0 0.0
    %566 = vmatpush.xpose.msra.mxu0 0.0
    %567 = vmatpush.xpose.msra.mxu0 0.0
    %568 = vmatpush.xpose.msra.mxu0 0.0
    %569 = vmatpush.xpose.msra.mxu0 0.0
    %570 = vmatpush.xpose.msra.mxu0 0.0
    %571 = vmatpush.xpose.msra.mxu0 0.0
    %572 = vmatpush.xpose.msra.mxu0 0.0
    %573 = vmatpush.xpose.msra.mxu0 0.0
    %574 = vmatpush.xpose.msra.mxu0 0.0
    %575 = vmatpush.xpose.msra.mxu0 %v558
    %576 = vmatmul.f32.gmra.mxu0 %v556
    %v577 = vpop.f32.mrf.mxu0
    %v578 = vadd.f32 0.0, %v577
    %579 = vdwg.mxu0
    %580 = vrot.lane.b32.xlu0 %v172, 112
    %v581 = vpop.permute.xlu0 %580
    %582 = vrot.lane.b32.xlu0 %v202, 112
    %v583 = vpop.permute.xlu0 %582
    %v584 = vsel %vm235, %v581, 0
    %v586 = vsel %vm235, %v583, 0
    %588 = vmatpush.xpose.msra.mxu0 0.0
    %589 = vmatpush.xpose.msra.mxu0 0.0
    %590 = vmatpush.xpose.msra.mxu0 0.0
    %591 = vmatpush.xpose.msra.mxu0 0.0
    %592 = vmatpush.xpose.msra.mxu0 0.0
    %593 = vmatpush.xpose.msra.mxu0 0.0
    %594 = vmatpush.xpose.msra.mxu0 0.0
    %595 = vmatpush.xpose.msra.mxu0 0.0
    %596 = vmatpush.xpose.msra.mxu0 0.0
    %597 = vmatpush.xpose.msra.mxu0 0.0
    %598 = vmatpush.xpose.msra.mxu0 0.0
    %599 = vmatpush.xpose.msra.mxu0 0.0
    %600 = vmatpush.xpose.msra.mxu0 0.0
    %601 = vmatpush.xpose.msra.mxu0 0.0
    %602 = vmatpush.xpose.msra.mxu0 0.0
    %603 = vmatpush.xpose.msra.mxu0 %v586
    %604 = vmatmul.f32.gmra.mxu0 %v584
    %v605 = vpop.f32.mrf.mxu0
    %v606 = vadd.f32 0.0, %v605
    %607 = vdwg.mxu0
    %v608 = vsel %vm131, -1e+09, %v578
    %v609 = vsel %vm132, -1e+09, %v606
    %v610 = vsel %vm235, %v608, -inf
    %611 = vmax.xlane.f32.xlu0 %v610
    %v612 = vpop.xlane.xlu0 %611
    %v613 = vsel %vm235, %v609, -inf
    %614 = vmax.xlane.f32.xlu0 %v613
    %v615 = vpop.xlane.xlu0 %614
    %v616 = vsub.f32 %v608, %v612
    %v617 = vsub.f32 %v609, %v615
    %v618 = vmul.f32 %v616, 1.442695
    %v619 = vpow.pop %v618
    %v620 = vmul.f32 %v617, 1.442695
    %v621 = vpow.pop %v620
    %v622 = vsel %vm235, %v619, 0.0
    %623 = vadd.xlane.f32.xlu0 %v622
    %v624 = vpop.xlane.xlu0 %623
    %v625 = vsel %vm235, %v621, 0.0
    %626 = vadd.xlane.f32.xlu0 %v625
    %v627 = vpop.xlane.xlu0 %626
    %v628 = vrcp.pop %v624
    %v629 = vrcp.pop %v627
    %v630 = vmul.f32 %v619, %v628
    %v631 = vmul.f32 %v621, %v629
    %632 = vrot.lane.b32.xlu0 %v230, 112
    %v633 = vpop.permute.xlu0 %632
    %v636 = vsel %vm235, %v630, 0
    %638 = vmatpush.msra.mxu0 0.0
    %639 = vmatpush.msra.mxu0 0.0
    %640 = vmatpush.msra.mxu0 0.0
    %641 = vmatpush.msra.mxu0 0.0
    %642 = vmatpush.msra.mxu0 0.0
    %643 = vmatpush.msra.mxu0 0.0
    %644 = vmatpush.msra.mxu0 0.0
    %645 = vmatpush.msra.mxu0 0.0
    %646 = vmatpush.msra.mxu0 0.0
    %647 = vmatpush.msra.mxu0 0.0
    %648 = vmatpush.msra.mxu0 0.0
    %649 = vmatpush.msra.mxu0 0.0
    %650 = vmatpush.msra.mxu0 0.0
    %651 = vmatpush.msra.mxu0 0.0
    %652 = vmatpush.msra.mxu0 0.0
    %653 = vmatpush.msra.mxu0 %v633
    %654 = vmatmul.f32.gmra.mxu0 %v636
    %v655 = vpop.f32.mrf.mxu0
    %v656 = vadd.f32 0.0, %v655
    %657 = vdwg.mxu0
    %658 = vrot.lane.b32.xlu0 %v233, 112
    %v659 = vpop.permute.xlu0 %658
    %v662 = vsel %vm235, %v631, 0
    %664 = vmatpush.msra.mxu0 0.0
    %665 = vmatpush.msra.mxu0 0.0
    %666 = vmatpush.msra.mxu0 0.0
    %667 = vmatpush.msra.mxu0 0.0
    %668 = vmatpush.msra.mxu0 0.0
    %669 = vmatpush.msra.mxu0 0.0
    %670 = vmatpush.msra.mxu0 0.0
    %671 = vmatpush.msra.mxu0 0.0
    %672 = vmatpush.msra.mxu0 0.0
    %673 = vmatpush.msra.mxu0 0.0
    %674 = vmatpush.msra.mxu0 0.0
    %675 = vmatpush.msra.mxu0 0.0
    %676 = vmatpush.msra.mxu0 0.0
    %677 = vmatpush.msra.mxu0 0.0
    %678 = vmatpush.msra.mxu0 0.0
    %679 = vmatpush.msra.mxu0 %v659
    %680 = vmatmul.f32.gmra.mxu0 %v662
    %v681 = vpop.f32.mrf.mxu0
    %v682 = vadd.f32 0.0, %v681
    %683 = vdwg.mxu0
    %v684 = vld [vmem:[#allocation7 + $0x10] sm:$0xff]
    %v686 = vsel %vm235, %v656, 0
    %v689 = vsel %vm235, %v682, 0
    %691 = vmatpush.msra.mxu0 0.0
    %692 = vmatpush.msra.mxu0 0.0
    %693 = vmatpush.msra.mxu0 0.0
    %694 = vmatpush.msra.mxu0 0.0
    %695 = vmatpush.msra.mxu0 0.0
    %696 = vmatpush.msra.mxu0 0.0
    %697 = vmatpush.msra.mxu0 0.0
    %698 = vmatpush.msra.mxu0 0.0
    %699 = vmatpush.msra.mxu0 0.0
    %700 = vmatpush.msra.mxu0 0.0
    %701 = vmatpush.msra.mxu0 0.0
    %702 = vmatpush.msra.mxu0 0.0
    %703 = vmatpush.msra.mxu0 0.0
    %704 = vmatpush.msra.mxu0 0.0
    %705 = vmatpush.msra.mxu0 0.0
    %706 = vmatpush.msra.mxu0 %v684
    %707 = vmatmul.f32.gmra.mxu0 %v686
    %v708 = vpop.f32.mrf.mxu0
    %v709 = vadd.f32 0.0, %v708
    %710 = vmatmul.f32.gmra.mxu0 %v689
    %v711 = vpop.f32.mrf.mxu0
    %v712 = vadd.f32 0.0, %v711
    %713 = vdwg.mxu0
    %v714 = vadd.f32 %v547, %v709
    %v715 = vadd.f32 %v550, %v712
    %716 = vrot.lane.b32.xlu0 %v171, 104
    %v717 = vpop.permute.xlu0 %716
    %718 = vrot.lane.b32.xlu0 %v199, 104
    %v719 = vpop.permute.xlu0 %718
    %v720 = vsel %vm235, %v717, 0
    %v722 = vsel %vm235, %v719, 0
    %724 = vmatpush.xpose.msra.mxu0 0.0
    %725 = vmatpush.xpose.msra.mxu0 0.0
    %726 = vmatpush.xpose.msra.mxu0 0.0
    %727 = vmatpush.xpose.msra.mxu0 0.0
    %728 = vmatpush.xpose.msra.mxu0 0.0
    %729 = vmatpush.xpose.msra.mxu0 0.0
    %730 = vmatpush.xpose.msra.mxu0 0.0
    %731 = vmatpush.xpose.msra.mxu0 0.0
    %732 = vmatpush.xpose.msra.mxu0 0.0
    %733 = vmatpush.xpose.msra.mxu0 0.0
    %734 = vmatpush.xpose.msra.mxu0 0.0
    %735 = vmatpush.xpose.msra.mxu0 0.0
    %736 = vmatpush.xpose.msra.mxu0 0.0
    %737 = vmatpush.xpose.msra.mxu0 0.0
    %738 = vmatpush.xpose.msra.mxu0 0.0
    %739 = vmatpush.xpose.msra.mxu0 %v722
    %740 = vmatmul.f32.gmra.mxu0 %v720
    %v741 = vpop.f32.mrf.mxu0
    %v742 = vadd.f32 0.0, %v741
    %743 = vdwg.mxu0
    %744 = vrot.lane.b32.xlu0 %v172, 104
    %v745 = vpop.permute.xlu0 %744
    %746 = vrot.lane.b32.xlu0 %v202, 104
    %v747 = vpop.permute.xlu0 %746
    %v748 = vsel %vm235, %v745, 0
    %v750 = vsel %vm235, %v747, 0
    %752 = vmatpush.xpose.msra.mxu0 0.0
    %753 = vmatpush.xpose.msra.mxu0 0.0
    %754 = vmatpush.xpose.msra.mxu0 0.0
    %755 = vmatpush.xpose.msra.mxu0 0.0
    %756 = vmatpush.xpose.msra.mxu0 0.0
    %757 = vmatpush.xpose.msra.mxu0 0.0
    %758 = vmatpush.xpose.msra.mxu0 0.0
    %759 = vmatpush.xpose.msra.mxu0 0.0
    %760 = vmatpush.xpose.msra.mxu0 0.0
    %761 = vmatpush.xpose.msra.mxu0 0.0
    %762 = vmatpush.xpose.msra.mxu0 0.0
    %763 = vmatpush.xpose.msra.mxu0 0.0
    %764 = vmatpush.xpose.msra.mxu0 0.0
    %765 = vmatpush.xpose.msra.mxu0 0.0
    %766 = vmatpush.xpose.msra.mxu0 0.0
    %767 = vmatpush.xpose.msra.mxu0 %v750
    %768 = vmatmul.f32.gmra.mxu0 %v748
    %v769 = vpop.f32.mrf.mxu0
    %v770 = vadd.f32 0.0, %v769
    %771 = vdwg.mxu0
    %v772 = vsel %vm131, -1e+09, %v742
    %v773 = vsel %vm132, -1e+09, %v770
    %v774 = vsel %vm235, %v772, -inf
    %775 = vmax.xlane.f32.xlu0 %v774
    %v776 = vpop.xlane.xlu0 %775
    %v777 = vsel %vm235, %v773, -inf
    %778 = vmax.xlane.f32.xlu0 %v777
    %v779 = vpop.xlane.xlu0 %778
    %v780 = vsub.f32 %v772, %v776
    %v781 = vsub.f32 %v773, %v779
    %v782 = vmul.f32 %v780, 1.442695
    %v783 = vpow.pop %v782
    %v784 = vmul.f32 %v781, 1.442695
    %v785 = vpow.pop %v784
    %v786 = vsel %vm235, %v783, 0.0
    %787 = vadd.xlane.f32.xlu0 %v786
    %v788 = vpop.xlane.xlu0 %787
    %v789 = vsel %vm235, %v785, 0.0
    %790 = vadd.xlane.f32.xlu0 %v789
    %v791 = vpop.xlane.xlu0 %790
    %v792 = vrcp.pop %v788
    %v793 = vrcp.pop %v791
    %v794 = vmul.f32 %v783, %v792
    %v795 = vmul.f32 %v785, %v793
    %796 = vrot.lane.b32.xlu0 %v230, 104
    %v797 = vpop.permute.xlu0 %796
    %v800 = vsel %vm235, %v794, 0
    %802 = vmatpush.msra.mxu0 0.0
    %803 = vmatpush.msra.mxu0 0.0
    %804 = vmatpush.msra.mxu0 0.0
    %805 = vmatpush.msra.mxu0 0.0
    %806 = vmatpush.msra.mxu0 0.0
    %807 = vmatpush.msra.mxu0 0.0
    %808 = vmatpush.msra.mxu0 0.0
    %809 = vmatpush.msra.mxu0 0.0
    %810 = vmatpush.msra.mxu0 0.0
    %811 = vmatpush.msra.mxu0 0.0
    %812 = vmatpush.msra.mxu0 0.0
    %813 = vmatpush.msra.mxu0 0.0
    %814 = vmatpush.msra.mxu0 0.0
    %815 = vmatpush.msra.mxu0 0.0
    %816 = vmatpush.msra.mxu0 0.0
    %817 = vmatpush.msra.mxu0 %v797
    %818 = vmatmul.f32.gmra.mxu0 %v800
    %v819 = vpop.f32.mrf.mxu0
    %v820 = vadd.f32 0.0, %v819
    %821 = vdwg.mxu0
    %822 = vrot.lane.b32.xlu0 %v233, 104
    %v823 = vpop.permute.xlu0 %822
    %v826 = vsel %vm235, %v795, 0
    %828 = vmatpush.msra.mxu0 0.0
    %829 = vmatpush.msra.mxu0 0.0
    %830 = vmatpush.msra.mxu0 0.0
    %831 = vmatpush.msra.mxu0 0.0
    %832 = vmatpush.msra.mxu0 0.0
    %833 = vmatpush.msra.mxu0 0.0
    %834 = vmatpush.msra.mxu0 0.0
    %835 = vmatpush.msra.mxu0 0.0
    %836 = vmatpush.msra.mxu0 0.0
    %837 = vmatpush.msra.mxu0 0.0
    %838 = vmatpush.msra.mxu0 0.0
    %839 = vmatpush.msra.mxu0 0.0
    %840 = vmatpush.msra.mxu0 0.0
    %841 = vmatpush.msra.mxu0 0.0
    %842 = vmatpush.msra.mxu0 0.0
    %843 = vmatpush.msra.mxu0 %v823
    %844 = vmatmul.f32.gmra.mxu0 %v826
    %v845 = vpop.f32.mrf.mxu0
    %v846 = vadd.f32 0.0, %v845
    %847 = vdwg.mxu0
    %v848 = vld [vmem:[#allocation7 + $0x18] sm:$0xff]
    %v850 = vsel %vm235, %v820, 0
    %v853 = vsel %vm235, %v846, 0
    %855 = vmatpush.msra.mxu0 0.0
    %856 = vmatpush.msra.mxu0 0.0
    %857 = vmatpush.msra.mxu0 0.0
    %858 = vmatpush.msra.mxu0 0.0
    %859 = vmatpush.msra.mxu0 0.0
    %860 = vmatpush.msra.mxu0 0.0
    %861 = vmatpush.msra.mxu0 0.0
    %862 = vmatpush.msra.mxu0 0.0
    %863 = vmatpush.msra.mxu0 0.0
    %864 = vmatpush.msra.mxu0 0.0
    %865 = vmatpush.msra.mxu0 0.0
    %866 = vmatpush.msra.mxu0 0.0
    %867 = vmatpush.msra.mxu0 0.0
    %868 = vmatpush.msra.mxu0 0.0
    %869 = vmatpush.msra.mxu0 0.0
    %870 = vmatpush.msra.mxu0 %v848
    %871 = vmatmul.f32.gmra.mxu0 %v850
    %v872 = vpop.f32.mrf.mxu0
    %v873 = vadd.f32 0.0, %v872
    %874 = vmatmul.f32.gmra.mxu0 %v853
    %v875 = vpop.f32.mrf.mxu0
    %v876 = vadd.f32 0.0, %v875
    %877 = vdwg.mxu0
    %v878 = vadd.f32 %v714, %v873
    %v879 = vadd.f32 %v715, %v876
    %v880 = vld [vmem:[%s9] sm:$0x1]
    %v882 = vperm.slane %v880, 0
    %v884 = vadd.f32 %v878, %v882
    %v885 = vadd.f32 %v879, %v882
    %v886 = vadd.f32 %v123, %v884
    %v887 = vadd.f32 %v124, %v885
    %v888 = vld [vmem:[%s10] sm:$0x1]
    %v889 = vld [vmem:[%s11] sm:$0x1]
    %v890 = vsel %vm141, %v886, 0.0
    %891 = vadd.xlane.f32.xlu0 %v890
    %v892 = vpop.xlane.xlu0 %891
    %v893 = vsel %vm141, %v887, 0.0
    %894 = vadd.xlane.f32.xlu0 %v893
    %v895 = vpop.xlane.xlu0 %894
    %v896 = vrcp.pop 32.0
    %v897 = vmul.f32 32.0, %v896
    %v898 = vsub.f32 1.0, %v897
    %v899 = vmul.f32 %v896, %v898
    %v900 = vadd.f32 %v896, %v899
    %vm901 = vweird.f32 %v896
    %v902 = vsel %vm901, %v896, %v900
    %v903 = vmul.f32 %v892, %v902
    %v904 = vmul.f32 %v895, %v902
    %v905 = vsub.f32 %v886, %v903
    %v906 = vsub.f32 %v887, %v904
    %v907 = vmul.f32 %v905, %v905
    %v908 = vmul.f32 %v906, %v906
    %v909 = vsel %vm141, %v907, 0.0
    %910 = vadd.xlane.f32.xlu0 %v909
    %v911 = vpop.xlane.xlu0 %910
    %v912 = vsel %vm141, %v908, 0.0
    %913 = vadd.xlane.f32.xlu0 %v912
    %v914 = vpop.xlane.xlu0 %913
    %v915 = vmul.f32 %v911, %v902
    %v916 = vmul.f32 %v914, %v902
    %v917 = vadd.f32 %v915, 1e-05
    %v918 = vadd.f32 %v916, 1e-05
    %v919 = vrsqrt.pop %v917
    %v920 = vmul.f32 %v919, %v917
    %v921 = vmul.f32 %v920, %v919
    %v922 = vmul.f32 0.5, %v921
    %v923 = vsub.f32 1.5, %v922
    %v924 = vmul.f32 %v919, %v923
    %vm925 = vweird.f32 %v917
    %vm926 = vweird.f32 %v919
    %vm927 = vmor %vm925, %vm926
    %v928 = vsel %vm927, %v919, %v924
    %v929 = vrsqrt.pop %v918
    %v930 = vmul.f32 %v929, %v918
    %v931 = vmul.f32 %v930, %v929
    %v932 = vmul.f32 0.5, %v931
    %v933 = vsub.f32 1.5, %v932
    %v934 = vmul.f32 %v929, %v933
    %vm935 = vweird.f32 %v918
    %vm936 = vweird.f32 %v929
    %vm937 = vmor %vm935, %vm936
    %v938 = vsel %vm937, %v929, %v934
    %v939 = vmul.f32 %v905, %v928
    %v940 = vmul.f32 %v906, %v938
    %v942 = vperm.slane %v888, 0
    %v944 = vmul.f32 %v939, %v942
    %v945 = vmul.f32 %v940, %v942
    %v947 = vperm.slane %v889, 0
    %v949 = vadd.f32 %v944, %v947
    %v950 = vadd.f32 %v945, %v947
    %v951 = vld [vmem:[#allocation8] sm:$0xff]
    %v952 = vld [vmem:[#allocation8 + $0x8] sm:$0xff]
    %v953 = vld [vmem:[#allocation8 + $0x10] sm:$0xff]
    %v954 = vld [vmem:[#allocation8 + $0x18] sm:$0xff]
    %v955 = vld [vmem:[%s13] sm:$0x1]
    %v957 = vperm.slane %v955, 0
    %v960 = vsel %vm141, %v949, 0
    %v963 = vsel %vm141, %v950, 0
    %965 = vmatpush.msra.mxu0 0.0
    %966 = vmatpush.msra.mxu0 0.0
    %967 = vmatpush.msra.mxu0 0.0
    %968 = vmatpush.msra.mxu0 0.0
    %969 = vmatpush.msra.mxu0 0.0
    %970 = vmatpush.msra.mxu0 0.0
    %971 = vmatpush.msra.mxu0 0.0
    %972 = vmatpush.msra.mxu0 0.0
    %973 = vmatpush.msra.mxu0 0.0
    %974 = vmatpush.msra.mxu0 0.0
    %975 = vmatpush.msra.mxu0 0.0
    %976 = vmatpush.msra.mxu0 0.0
    %977 = vmatpush.msra.mxu0 %v954
    %978 = vmatpush.msra.mxu0 %v953
    %979 = vmatpush.msra.mxu0 %v952
    %980 = vmatpush.msra.mxu0 %v951
    %981 = vmatmul.f32.gmra.mxu0 %v960
    %v982 = vpop.f32.mrf.mxu0
    %v983 = vadd.f32 %v957, %v982
    %984 = vmatmul.f32.gmra.mxu0 %v963
    %v985 = vpop.f32.mrf.mxu0
    %v986 = vadd.f32 %v957, %v985
    %987 = vdwg.mxu0
    %v988 = vmax.f32 %v983, 0.0
    %v989 = vmax.f32 %v986, 0.0
    %v990 = vld [vmem:[%s14] sm:$0xff]
    %v991 = vld [vmem:[%s14 + $0x8] sm:$0xff]
    %v992 = vld [vmem:[%s14 + $0x10] sm:$0xff]
    %v993 = vld [vmem:[%s14 + $0x18] sm:$0xff]
    %v994 = vld [vmem:[%s14 + $0x20] sm:$0xff]
    %v995 = vld [vmem:[%s14 + $0x28] sm:$0xff]
    %v996 = vld [vmem:[%s14 + $0x30] sm:$0xff]
    %v997 = vld [vmem:[%s14 + $0x38] sm:$0xff]
    %v998 = vld [vmem:[%s15] sm:$0x1]
    %v1000 = vperm.slane %v998, 0
    %vm1002 = vcmask 523264
    %v1004 = vsel %vm1002, %v988, 0
    %v1007 = vsel %vm1002, %v989, 0
    %1009 = vmatpush.msra.mxu0 0.0
    %1010 = vmatpush.msra.mxu0 0.0
    %1011 = vmatpush.msra.mxu0 0.0
    %1012 = vmatpush.msra.mxu0 0.0
    %1013 = vmatpush.msra.mxu0 0.0
    %1014 = vmatpush.msra.mxu0 0.0
    %1015 = vmatpush.msra.mxu0 0.0
    %1016 = vmatpush.msra.mxu0 0.0
    %1017 = vmatpush.msra.mxu0 %v997
    %1018 = vmatpush.msra.mxu0 %v996
    %1019 = vmatpush.msra.mxu0 %v995
    %1020 = vmatpush.msra.mxu0 %v994
    %1021 = vmatpush.msra.mxu0 %v993
    %1022 = vmatpush.msra.mxu0 %v992
    %1023 = vmatpush.msra.mxu0 %v991
    %1024 = vmatpush.msra.mxu0 %v990
    %1025 = vmatmul.f32.gmra.mxu0 %v1004
    %v1026 = vpop.f32.mrf.mxu0
    %v1027 = vadd.f32 %v1000, %v1026
    %1028 = vmatmul.f32.gmra.mxu0 %v1007
    %v1029 = vpop.f32.mrf.mxu0
    %v1030 = vadd.f32 %v1000, %v1029
    %1031 = vdwg.mxu0
    %v1032 = vadd.f32 %v949, %v1027
    %v1033 = vadd.f32 %v950, %v1030
    %v1034 = vld [vmem:[%s16] sm:$0x1]
    %v1035 = vld [vmem:[%s17] sm:$0x1]
    %v1036 = vsel %vm141, %v1032, 0.0
    %1037 = vadd.xlane.f32.xlu0 %v1036
    %v1038 = vpop.xlane.xlu0 %1037
    %v1039 = vsel %vm141, %v1033, 0.0
    %1040 = vadd.xlane.f32.xlu0 %v1039
    %v1041 = vpop.xlane.xlu0 %1040
    %v1042 = vmul.f32 %v1038, %v902
    %v1043 = vmul.f32 %v1041, %v902
    %v1044 = vsub.f32 %v1032, %v1042
    %v1045 = vsub.f32 %v1033, %v1043
    %v1046 = vmul.f32 %v1044, %v1044
    %v1047 = vmul.f32 %v1045, %v1045
    %v1048 = vsel %vm141, %v1046, 0.0
    %1049 = vadd.xlane.f32.xlu0 %v1048
    %v1050 = vpop.xlane.xlu0 %1049
    %v1051 = vsel %vm141, %v1047, 0.0
    %1052 = vadd.xlane.f32.xlu0 %v1051
    %v1053 = vpop.xlane.xlu0 %1052
    %v1054 = vmul.f32 %v1050, %v902
    %v1055 = vmul.f32 %v1053, %v902
    %v1056 = vadd.f32 %v1054, 1e-05
    %v1057 = vadd.f32 %v1055, 1e-05
    %v1058 = vrsqrt.pop %v1056
    %v1059 = vmul.f32 %v1058, %v1056
    %v1060 = vmul.f32 %v1059, %v1058
    %v1061 = vmul.f32 0.5, %v1060
    %v1062 = vsub.f32 1.5, %v1061
    %v1063 = vmul.f32 %v1058, %v1062
    %vm1064 = vweird.f32 %v1056
    %vm1065 = vweird.f32 %v1058
    %vm1066 = vmor %vm1064, %vm1065
    %v1067 = vsel %vm1066, %v1058, %v1063
    %v1068 = vrsqrt.pop %v1057
    %v1069 = vmul.f32 %v1068, %v1057
    %v1070 = vmul.f32 %v1069, %v1068
    %v1071 = vmul.f32 0.5, %v1070
    %v1072 = vsub.f32 1.5, %v1071
    %v1073 = vmul.f32 %v1068, %v1072
    %vm1074 = vweird.f32 %v1057
    %vm1075 = vweird.f32 %v1068
    %vm1076 = vmor %vm1074, %vm1075
    %v1077 = vsel %vm1076, %v1068, %v1073
    %v1078 = vmul.f32 %v1044, %v1067
    %v1079 = vmul.f32 %v1045, %v1077
    %v1081 = vperm.slane %v1034, 0
    %v1083 = vmul.f32 %v1078, %v1081
    %v1084 = vmul.f32 %v1079, %v1081
    %v1086 = vperm.slane %v1035, 0
    %v1088 = vadd.f32 %v1083, %v1086
    %v1089 = vadd.f32 %v1084, %v1086
    %1090 = vst.msk [vmem:[#allocation10] sm:$0xff] %vm141, %v1088
    %1091 = vst.msk [vmem:[#allocation10 + $0x8] sm:$0xff] %vm141, %v1089
    // Predicated region
    $region90: #{tpu_custom_call.1} parent=1 // pred_check
      _
    $region91: #{tpu_custom_call.1} parent=1 // pred_check_branch
      %1093 = sbr.rel (0) target = $region93
    $region92: #{tpu_custom_call.1} parent=1 // pred_region
      %1095 = vsyncadd [#allocation4], 0
      %s1096 = sshll.u32 [#allocation10], 4
      %s1097 = int_to_ptr.vmem [resolvable:$true] %s1096
      %s1098 = sshll.u32 %s18, 4
      %s1099 = int_to_ptr.hbm [resolvable:$true] %s1098
      %1104 = dma.vmem_to_hbm [thread:$0]  %s1097, 256, %s1099, [#allocation4], 128, 128, 8
    $region93: #{tpu_custom_call.1} parent=1 // pred_fallthru
      _
    // Predicated region
    $region94: #{tpu_custom_call.1} parent=1 // pred_check
      _
    $region95: #{tpu_custom_call.1} parent=1 // pred_check_branch
      %1106 = sbr.rel (0) target = $region97
    $region96: #{tpu_custom_call.1} parent=1 // pred_region
      %1108 = dma.done [#allocation4], 256
    $region97: #{tpu_custom_call.1} parent=1 // pred_fallthru
      _
    %1109 = vsyncpa [#allocation3], 1
    %1110 = vsyncpa [#allocation6], 1
    %1111 = vsyncpa [#allocation9], 1
    %1112 = vsyncpa [#allocation4], 1

</llo_original>
